<compile_context>
chip_gen: v6e
topology: v6e:2x2x1
jax: 0.10.0
libtpu: 0.0.40
codegen_flags: <defaults>
</compile_context>

<pallas_src>
import functools

import jax
import jax.numpy as jnp
import numpy as np
from jax.experimental import pallas as pl
from jax.experimental.pallas import tpu as pltpu

_LANES = 128
_SUBLANES = 8
_MAX_TILE_ROWS = 2048            # (2048,128) f32 tile = 1 MiB per slab
_VMEM_LIMIT = 32 * 1024 * 1024   # explicit scoped budget, safe on v5e/v6e/v7x
_MAX_PAD_WASTE = 4               # bucket segments so padding waste <= ~4x
_NUM_CORES = 2                   # v7x megacore split; serial loop on v5e/v6e
_TAU = 0.04
_R_PAD = -1e18                   # finite: keeps (r + m) and d finite in padding


def _cdiv(a, b):
    return (a + b - 1) // b


def _round_up(a, b):
    return _cdiv(a, b) * b


def _rows_of(numel):
    return max(1, _cdiv(numel, _LANES))


# ----------------------------------------------------------------------------
# Static (trace-time) segment layout: bucketing, per-core tile schedule, slabs
# ----------------------------------------------------------------------------
def _bucket_segments(numels):
    """Group segments so that padding each one up to its bucket's tile size
    wastes at most ~_MAX_PAD_WASTE x (score maps are much smaller than the
    hidden feature maps)."""
    eff = [min(_round_up(_rows_of(n), _SUBLANES), _MAX_TILE_ROWS)
           for n in numels]
    order = sorted(range(len(numels)), key=lambda i: eff[i], reverse=True)
    buckets = []                                   # {"tile_rows", "idx"}
    for i in order:
        placed = False
        for b in buckets:
            if b["tile_rows"] <= eff[i] * _MAX_PAD_WASTE:
                b["idx"].append(i)
                placed = True
                break
        if not placed:
            buckets.append({"tile_rows": eff[i], "idx": [i]})
    return buckets


def _build_schedule(numels, tile_rows):
    """Per-(core, step) -> (global slab tile, segment, first-tile flag).

    Whole segments are assigned to a single core so the resident per-segment
    accumulator and its pl.when zero-init stay correct per core.  If the two
    cores have unequal tile counts, the shorter schedule is padded with an
    all-pad dummy slab tile that contributes exactly zero, pointed at that
    core's last segment (so no spurious zero-init and no cross-core block)."""
    tiles = [max(1, _cdiv(_rows_of(n), tile_rows)) for n in numels]
    seg_off = np.concatenate([[0], np.cumsum(tiles)[:-1]]).astype(np.int32)
    total_tiles = int(np.sum(tiles))

    num_cores = _NUM_CORES if len(numels) >= _NUM_CORES else 1
    order = sorted(range(len(numels)), key=lambda i: tiles[i], reverse=True)
    groups = [[] for _ in range(num_cores)]
    load = [0] * num_cores
    for i in order:                                # greedy tile balancing
        c = int(np.argmin(load))
        groups[c].append(i)
        load[c] += tiles[i]
    tpc = max(load)
    need_dummy = num_cores * tpc > total_tiles
    dummy_tile = total_tiles                       # appended iff need_dummy

    tile_global = np.full((num_cores, tpc), dummy_tile, np.int32)
    tile_seg = np.zeros((num_cores, tpc), np.int32)
    tile_first = np.zeros((num_cores, tpc), np.int32)
    for c in range(num_cores):
        pos = 0
        for si in groups[c]:
            for k in range(tiles[si]):
                tile_global[c, pos] = seg_off[si] + k
                tile_seg[c, pos] = si
                tile_first[c, pos] = np.int32(k == 0)
                pos += 1
        tile_seg[c, pos:] = groups[c][-1]          # padding steps: revisit own
    return tiles, num_cores, tpc, need_dummy, tile_global, tile_seg, tile_first


def _pack_slab(tensors, pad, tiles, tile_rows, add_dummy_tile):
    """Flatten + pad every segment to whole (tile_rows, 128) tiles and stack
    into one tall lane-dense f32 slab (each tensor is materialized once)."""
    pieces = []
    for x, t in zip(tensors, tiles):
        flat = x.reshape(-1).astype(jnp.float32)
        total = t * tile_rows * _LANES
        if total > flat.shape[0]:
            flat = jnp.concatenate(
                [flat, jnp.full((total - flat.shape[0],), pad, jnp.float32)])
        pieces.append(flat)
    if add_dummy_tile:
        pieces.append(jnp.full((tile_rows * _LANES,), pad, jnp.float32))
    return jnp.concatenate(pieces).reshape(-1, _LANES)


# ----------------------------------------------------------------------------
# Pallas kernels
# ----------------------------------------------------------------------------
def _tilesum(x):
    """(tile_rows, 128) -> (8, 128) partial sums with sublane-aligned static
    slices + full-vreg VALU adds only (no XLU cross-sublane reduce)."""
    r = x.shape[0]
    acc = x[:_SUBLANES, :]
    for i in range(1, r // _SUBLANES):
        acc = acc + x[i * _SUBLANES:(i + 1) * _SUBLANES, :]
    return acc


def _feat_kernel(gtile_ref, seg_ref, first_ref, d_ref, out_ref):
    # per-segment sum(|rl - gl|); the diff slab is packed once in XLA so only
    # one slab is streamed from HBM; padding d == 0 contributes 0.
    del gtile_ref, seg_ref
    idx = pl.program_id(0) * pl.num_programs(1) + pl.program_id(1)

    @pl.when(first_ref[idx] == 1)
    def _():
        out_ref[...] = jnp.zeros_like(out_ref)

    out_ref[...] += _tilesum(jnp.abs(d_ref[...]))[None]


def _score_kernel(gtile_ref, seg_ref, first_ref, rm_ref, g_ref,
                  gen_ref, sq_ref, cnt_ref):
    # fused LSGAN-generator + TPRLS pass over one (real, gen) score pair:
    #   gen: sum((1 - g)^2)                      (padding g == 1     -> 0)
    #   sq : sum(d^2 [d < 0]),  d = g - (r + m)  (padding rm == -1e18 -> off)
    #   cnt: count of the mask
    # rm = real + median is precomputed in XLA during packing, so no per-step
    # SMEM scalar is needed and d*d never touches padding values.
    del gtile_ref, seg_ref
    idx = pl.program_id(0) * pl.num_programs(1) + pl.program_id(1)

    @pl.when(first_ref[idx] == 1)
    def _():
        gen_ref[...] = jnp.zeros_like(gen_ref)
        sq_ref[...] = jnp.zeros_like(sq_ref)
        cnt_ref[...] = jnp.zeros_like(cnt_ref)

    g = g_ref[...]
    om = 1.0 - g
    gen_ref[...] += _tilesum(om * om)[None]

    d = g - rm_ref[...]
    mask = d < 0.0
    dm = jnp.where(mask, d, 0.0)                 # pre-masked -> finite square
    sq_ref[...] += _tilesum(dm * dm)[None]
    cnt_ref[...] += _tilesum(jnp.where(mask, 1.0, 0.0))[None]


# ----------------------------------------------------------------------------
# Batched, bucketed pallas_call driver
# ----------------------------------------------------------------------------
def _bucket_call(kernel, tensor_lists, pads, tile_rows, num_outputs):
    numels = [int(np.prod(t.shape)) for t in tensor_lists[0]]
    n_seg = len(numels)
    tiles, num_cores, tpc, need_dummy, tg, ts, tf = _build_schedule(
        numels, tile_rows)

    slabs = [_pack_slab(tensors, pad, tiles, tile_rows, need_dummy)
             for tensors, pad in zip(tensor_lists, pads)]
    prefetch = [jnp.asarray(tg.ravel()), jnp.asarray(ts.ravel()),
                jnp.asarray(tf.ravel())]

    def slab_index(c, t, gtile_ref, seg_ref, first_ref):
        del seg_ref, first_ref
        return (gtile_ref[c * tpc + t], 0)

    def out_index(c, t, gtile_ref, seg_ref, first_ref):
        del gtile_ref, first_ref
        return (seg_ref[c * tpc + t], 0, 0)

    slab_spec = pl.BlockSpec((tile_rows, _LANES), slab_index)
    out_spec = pl.BlockSpec((1, _SUBLANES, _LANES), out_index)
    out_shape = jax.ShapeDtypeStruct((n_seg, _SUBLANES, _LANES), jnp.float32)

    outs = pl.pallas_call(
        kernel,
        out_shape=tuple([out_shape] * num_outputs),
        grid_spec=pltpu.PrefetchScalarGridSpec(
            num_scalar_prefetch=3,
            grid=(num_cores, tpc),
            in_specs=[slab_spec] * len(slabs),
            out_specs=tuple([out_spec] * num_outputs)),
        compiler_params=pltpu.CompilerParams(
            dimension_semantics=("parallel", "arbitrary"),
            vmem_limit_bytes=_VMEM_LIMIT),
    )(*prefetch, *slabs)
    if not isinstance(outs, (list, tuple)):
        outs = (outs,)
    # collapse each per-segment (8,128) vreg accumulator to a scalar in XLA
    return [o.sum(axis=(1, 2)) for o in outs]


def _bucketed_reduce(kernel, tensor_lists, pads, num_outputs):
    numels = [int(np.prod(t.shape)) for t in tensor_lists[0]]
    buckets = _bucket_segments(numels)
    chunks = [[] for _ in range(num_outputs)]
    seg_order = []
    for b in buckets:
        idx = b["idx"]
        seg_order.extend(idx)
        sub = [[lst[i] for i in idx] for lst in tensor_lists]
        outs = _bucket_call(kernel, sub, pads, b["tile_rows"], num_outputs)
        for k in range(num_outputs):
            chunks[k].append(outs[k])
    inv = np.argsort(np.asarray(seg_order))        # back to original order
    return [jnp.concatenate(c)[inv] for c in chunks]


# ----------------------------------------------------------------------------
# Host wrappers
# ----------------------------------------------------------------------------
def pallas_feature_means(real_feats, gen_feats):
    """Per-tensor mean(|rl - gl|), batched + bucketed pallas_calls over a
    single pre-differenced slab."""
    diffs = [r.astype(jnp.float32) - g.astype(jnp.float32)
             for r, g in zip(real_feats, gen_feats)]
    numels = [int(np.prod(d.shape)) for d in diffs]
    (sums,) = _bucketed_reduce(_feat_kernel, [diffs], [0.0], 1)
    return sums * jnp.asarray([1.0 / n for n in numels], jnp.float32)


def _torch_median(x):
    # torch.median = lower of the two middle values = (n-1)//2-th smallest.
    # TODO(synk): exact median selection has no clean Pallas TPU primitive; it
    # stays in XLA (jnp.partition) and is folded into the packed (r+m) slab.
    flat = x.reshape(-1)
    k = (flat.shape[0] - 1) // 2
    return jnp.partition(flat, k)[k]


def pallas_score_terms(real_scores, gen_scores):
    """Fused LSGAN + TPRLS reductions for every (real, gen) score pair.

    Returns (gen_means, l_rels) per score pair.
    """
    numels = [int(np.prod(g.shape)) for g in gen_scores]
    # torch binds dg <- real_score, dr <- gen_score; m = median(dr - dg).
    rm = []
    for r, g in zip(real_scores, gen_scores):
        r32 = r.astype(jnp.float32)
        m = _torch_median(g.astype(jnp.float32) - r32)
        rm.append(r32 + m)
    gen_sum, sq_sum, cnt = _bucketed_reduce(
        _score_kernel, [rm, gen_scores], [_R_PAD, 1.0], 3)
    gen_means = gen_sum * jnp.asarray([1.0 / n for n in numels], jnp.float32)
    # NOTE: matches torch semantics -- if no element satisfies dr < dg + m the
    # masked mean is 0/0 (NaN), exactly like torch.mean of an empty selection.
    l_rels = sq_sum / cnt
    return gen_means, l_rels


# ----------------------------------------------------------------------------
# Synthetic deterministic discriminator stand-ins (mpd / mrd / msbd are
# external constructor arguments of GeneratorLoss, not part of its own math).
# ----------------------------------------------------------------------------
HIDDEN = 8
N_LAYERS = 2
DISC_CONFIG = {"mpd": (2, 4), "mrd": (4, 8), "msbd": (2, 8)}


def _make_subdisc_params(key, cin):
    ks = jax.random.split(key, 2 * N_LAYERS + 2)
    layers = []
    c = cin
    for i in range(N_LAYERS):
        w = 0.3 * jax.random.normal(ks[2 * i], (c, HIDDEN), jnp.float32)
        b = 0.1 * jax.random.normal(ks[2 * i + 1], (HIDDEN,), jnp.float32)
        layers.append((w, b))
        c = HIDDEN
    pw = 0.3 * jax.random.normal(ks[-2], (c, 1), jnp.float32)
    pb = 0.1 * jax.random.normal(ks[-1], (1,), jnp.float32)
    return {"layers": layers, "proj": (pw, pb)}


def build_discriminators():
    base = jax.random.PRNGKey(42)
    discs = {}
    for di, (name, factors) in enumerate(DISC_CONFIG.items()):
        subs = []
        for j, period in enumerate(factors):
            key = jax.random.fold_in(base, di * 100 + j)
            subs.append((period, _make_subdisc_params(key, period)))
        discs[name] = subs
    return discs


def _subdisc_forward(period, params, x_bt):
    # TODO(synk): tiny einsums (C=2..8) stay in XLA; they use <1% of the MXU
    # and would need >=128-wide padding + bf16 to be worth a Pallas matmul.
    B, T = x_bt.shape
    L = T // period
    h = x_bt[:, : L * period].reshape(B, L, period)
    feats = []
    for w, b in params["layers"]:
        h = jnp.einsum("blc,cd->bld", h, w) + b
        h = jax.nn.leaky_relu(h, 0.1)
        feats.append(h)
    pw, pb = params["proj"]
    score = (jnp.einsum("blc,cd->bld", h, pw) + pb)[..., 0]  # (B, L)
    feats.append(score[..., None])
    return score, feats


def disc_model_forward(sub_discs, audio_gt, audio):
    real_score, gen_score, real_features, gen_features = [], [], [], []
    for period, params in sub_discs:
        rs, rf = _subdisc_forward(period, params, audio_gt)
        gs, gf = _subdisc_forward(period, params, audio)
        real_score.append(rs)
        gen_score.append(gs)
        real_features.append(rf)
        gen_features.append(gf)
    return real_score, gen_score, real_features, gen_features


# ----------------------------------------------------------------------------
# GeneratorLoss forward semantics (all reductions batched across the used
# discriminators into the bucketed Pallas calls above; the sums decompose
# exactly).
# ----------------------------------------------------------------------------
def generator_loss(discs, audio_gt, audio, used):
    feat_r, feat_g, score_r, score_g = [], [], [], []
    for key in used:
        rs, gs, rf, gf = disc_model_forward(discs[key], audio_gt, audio)
        for dr, dg in zip(rf, gf):
            for rl, gl in zip(dr, dg):
                feat_r.append(rl)
                feat_g.append(gl)
        score_r.extend(rs)
        score_g.extend(gs)

    feat_means = pallas_feature_means(feat_r, feat_g)
    gen_means, l_rels = pallas_score_terms(score_r, score_g)

    total = (2.0 * jnp.sum(feat_means)
             + jnp.sum(gen_means)
             + jnp.sum(_TAU - jax.nn.relu(_TAU - l_rels)))
    return jnp.mean(total)  # scalar, matches torch .mean()


# ----------------------------------------------------------------------------
# Pure-JAX reference for validation
# ----------------------------------------------------------------------------
def _torch_median_sort(x):
    flat = x.reshape(-1)
    return jnp.sort(flat)[(flat.shape[0] - 1) // 2]


def _helper_ref(real_score, gen_score, real_features, gen_features):
    feat = 0.0
    for dr, dg in zip(real_features, gen_features):
        for rl, gl in zip(dr, dg):
            feat = feat + jnp.mean(jnp.abs(rl - gl))
    feat = feat * 2.0
    gen = 0.0
    for dg in gen_score:
        gen = gen + jnp.mean((1.0 - dg) ** 2)
    tprls = 0.0
    for dg, dr in zip(real_score, gen_score):
        m = _torch_median_sort(dr - dg)
        d = dr - dg - m
        mask = dr < dg + m
        l_rel = jnp.sum(jnp.where(mask, d * d, 0.0)) / jnp.sum(mask)
        tprls = tprls + (_TAU - jax.nn.relu(_TAU - l_rel))
    return feat + gen + tprls


def generator_loss_ref(discs, audio_gt, audio, used):
    total = 0.0
    for key in used:
        rs, gs, rf, gf = disc_model_forward(discs[key], audio_gt, audio)
        total = total + _helper_ref(rs, gs, rf, gf)
    return jnp.mean(total)


# ----------------------------------------------------------------------------
if __name__ == "__main__":
    B, T = 2, 1024
    k1, k2 = jax.random.split(jax.random.PRNGKey(0))
    audio_gt = jax.random.normal(k1, (B, T), jnp.float32)
    audio = 0.8 * audio_gt + 0.3 * jax.random.normal(k2, (B, T), jnp.float32)

    used = ("mpd", "mrd", "msbd")
    discs = build_discriminators()

    loss_fn = jax.jit(functools.partial(generator_loss, discs, used=used))
    out = jax.block_until_ready(loss_fn(audio_gt, audio))

    ref = jax.block_until_ready(generator_loss_ref(discs, audio_gt, audio, used))
    np.testing.assert_allclose(float(out), float(ref), rtol=1e-3, atol=1e-4)
    assert np.isfinite(float(out))
    print("KERNEL_OK")
</pallas_src>

<mosaic_0001>
module attributes {stable_mosaic.version = 11 : i64} {
  func.func @_score_kernel(%arg0: i32, %arg1: i32, %arg2: memref<6xi32, #tpu.memory_space<smem>>, %arg3: memref<6xi32, #tpu.memory_space<smem>>, %arg4: memref<6xi32, #tpu.memory_space<smem>>, %arg5: memref<8x128xf32, #tpu.memory_space<vmem>>, %arg6: memref<8x128xf32, #tpu.memory_space<vmem>>, %arg7: memref<1x8x128xf32, #tpu.memory_space<vmem>>, %arg8: memref<1x8x128xf32, #tpu.memory_space<vmem>>, %arg9: memref<1x8x128xf32, #tpu.memory_space<vmem>>) attributes {dimension_semantics = [#tpu.dimension_semantics<parallel>, #tpu.dimension_semantics<arbitrary>], iteration_bounds = array<i64: 2, 3>, scalar_prefetch = 3 : i64, scratch_operands = 0 : i64, tpu.core_type = #tpu.core_type<tc>, window_params = [{transform_indices = @transform_0, window_bounds = array<i64: 8, 128>}, {transform_indices = @transform_1, window_bounds = array<i64: 8, 128>}, {transform_indices = @transform_2, window_bounds = array<i64: 1, 8, 128>}, {transform_indices = @transform_3, window_bounds = array<i64: 1, 8, 128>}, {transform_indices = @transform_4, window_bounds = array<i64: 1, 8, 128>}]} {
    %c3_i32 = arith.constant 3 : i32
    %0 = arith.muli %arg0, %c3_i32 : i32
    %1 = arith.addi %0, %arg1 : i32
    %2 = arith.index_cast %1 : i32 to index
    %3 = memref.load %arg4[%2] : memref<6xi32, #tpu.memory_space<smem>>
    %c1_i32 = arith.constant 1 : i32
    %4 = arith.cmpi eq, %3, %c1_i32 : i32
    %5 = arith.extui %4 : i1 to i32
    %c0_i32 = arith.constant 0 : i32
    %6 = arith.cmpi ne, %5, %c0_i32 : i32
    scf.if %6 {
      %cst_25 = arith.constant 0.000000e+00 : f32
      %33 = vector.broadcast %cst_25 : f32 to vector<1x8x128xf32>
      %c0_26 = arith.constant 0 : index
      %c0_27 = arith.constant 0 : index
      %c0_28 = arith.constant 0 : index
      %34 = vector.load %arg7[%c0_26, %c0_27, %c0_28] : memref<1x8x128xf32, #tpu.memory_space<vmem>>, vector<1x8x128xf32>
      tpu.vector_store %arg7[%c0_26, %c0_27, %c0_28], %33 {strides = array<i32>} : memref<1x8x128xf32, #tpu.memory_space<vmem>>, vector<1x8x128xf32>,
      %cst_29 = arith.constant 0.000000e+00 : f32
      %35 = vector.broadcast %cst_29 : f32 to vector<1x8x128xf32>
      %c0_30 = arith.constant 0 : index
      %c0_31 = arith.constant 0 : index
      %c0_32 = arith.constant 0 : index
      %36 = vector.load %arg8[%c0_30, %c0_31, %c0_32] : memref<1x8x128xf32, #tpu.memory_space<vmem>>, vector<1x8x128xf32>
      tpu.vector_store %arg8[%c0_30, %c0_31, %c0_32], %35 {strides = array<i32>} : memref<1x8x128xf32, #tpu.memory_space<vmem>>, vector<1x8x128xf32>,
      %cst_33 = arith.constant 0.000000e+00 : f32
      %37 = vector.broadcast %cst_33 : f32 to vector<1x8x128xf32>
      %c0_34 = arith.constant 0 : index
      %c0_35 = arith.constant 0 : index
      %c0_36 = arith.constant 0 : index
      %38 = vector.load %arg9[%c0_34, %c0_35, %c0_36] : memref<1x8x128xf32, #tpu.memory_space<vmem>>, vector<1x8x128xf32>
      tpu.vector_store %arg9[%c0_34, %c0_35, %c0_36], %37 {strides = array<i32>} : memref<1x8x128xf32, #tpu.memory_space<vmem>>, vector<1x8x128xf32>,
    } else {
    }
    %c0 = arith.constant 0 : index
    %c0_0 = arith.constant 0 : index
    %7 = vector.load %arg6[%c0, %c0_0] : memref<8x128xf32, #tpu.memory_space<vmem>>, vector<8x128xf32>
    %cst = arith.constant 1.000000e+00 : f32
    %8 = vector.broadcast %cst : f32 to vector<8x128xf32>
    %9 = arith.subf %8, %7 : vector<8x128xf32>
    %c0_1 = arith.constant 0 : index
    %c0_2 = arith.constant 0 : index
    %c0_3 = arith.constant 0 : index
    %10 = vector.load %arg7[%c0_1, %c0_2, %c0_3] : memref<1x8x128xf32, #tpu.memory_space<vmem>>, vector<1x8x128xf32>
    %11 = arith.mulf %9, %9 : vector<8x128xf32>
    %12 = vector.shape_cast %11 : vector<8x128xf32> to vector<1x8x128xf32>
    %13 = arith.addf %10, %12 : vector<1x8x128xf32>
    %c0_4 = arith.constant 0 : index
    %c0_5 = arith.constant 0 : index
    %c0_6 = arith.constant 0 : index
    %14 = vector.load %arg7[%c0_4, %c0_5, %c0_6] : memref<1x8x128xf32, #tpu.memory_space<vmem>>, vector<1x8x128xf32>
    tpu.vector_store %arg7[%c0_4, %c0_5, %c0_6], %13 {strides = array<i32>} : memref<1x8x128xf32, #tpu.memory_space<vmem>>, vector<1x8x128xf32>,
    %c0_7 = arith.constant 0 : index
    %c0_8 = arith.constant 0 : index
    %15 = vector.load %arg5[%c0_7, %c0_8] : memref<8x128xf32, #tpu.memory_space<vmem>>, vector<8x128xf32>
    %16 = arith.subf %7, %15 : vector<8x128xf32>
    %cst_9 = arith.constant 0.000000e+00 : f32
    %17 = vector.broadcast %cst_9 : f32 to vector<8x128xf32>
    %18 = arith.cmpf olt, %16, %17 : vector<8x128xf32>
    %cst_10 = arith.constant 0.000000e+00 : f32
    %19 = vector.broadcast %cst_10 : f32 to vector<8x128xf32>
    %20 = arith.select %18, %16, %19 : vector<8x128xi1>, vector<8x128xf32>
    %c0_11 = arith.constant 0 : index
    %c0_12 = arith.constant 0 : index
    %c0_13 = arith.constant 0 : index
    %21 = vector.load %arg8[%c0_11, %c0_12, %c0_13] : memref<1x8x128xf32, #tpu.memory_space<vmem>>, vector<1x8x128xf32>
    %22 = arith.mulf %20, %20 : vector<8x128xf32>
    %23 = vector.shape_cast %22 : vector<8x128xf32> to vector<1x8x128xf32>
    %24 = arith.addf %21, %23 : vector<1x8x128xf32>
    %c0_14 = arith.constant 0 : index
    %c0_15 = arith.constant 0 : index
    %c0_16 = arith.constant 0 : index
    %25 = vector.load %arg8[%c0_14, %c0_15, %c0_16] : memref<1x8x128xf32, #tpu.memory_space<vmem>>, vector<1x8x128xf32>
    tpu.vector_store %arg8[%c0_14, %c0_15, %c0_16], %24 {strides = array<i32>} : memref<1x8x128xf32, #tpu.memory_space<vmem>>, vector<1x8x128xf32>,
    %c0_17 = arith.constant 0 : index
    %c0_18 = arith.constant 0 : index
    %c0_19 = arith.constant 0 : index
    %26 = vector.load %arg9[%c0_17, %c0_18, %c0_19] : memref<1x8x128xf32, #tpu.memory_space<vmem>>, vector<1x8x128xf32>
    %cst_20 = arith.constant 1.000000e+00 : f32
    %cst_21 = arith.constant 0.000000e+00 : f32
    %27 = vector.broadcast %cst_20 : f32 to vector<8x128xf32>
    %28 = vector.broadcast %cst_21 : f32 to vector<8x128xf32>
    %29 = arith.select %18, %27, %28 : vector<8x128xi1>, vector<8x128xf32>
    %30 = vector.shape_cast %29 : vector<8x128xf32> to vector<1x8x128xf32>
    %31 = arith.addf %26, %30 : vector<1x8x128xf32>
    %c0_22 = arith.constant 0 : index
    %c0_23 = arith.constant 0 : index
    %c0_24 = arith.constant 0 : index
    %32 = vector.load %arg9[%c0_22, %c0_23, %c0_24] : memref<1x8x128xf32, #tpu.memory_space<vmem>>, vector<1x8x128xf32>
    tpu.vector_store %arg9[%c0_22, %c0_23, %c0_24], %31 {strides = array<i32>} : memref<1x8x128xf32, #tpu.memory_space<vmem>>, vector<1x8x128xf32>,
    return
  }
  func.func @transform_0(%arg0: i32, %arg1: i32, %arg2: memref<6xi32, #tpu.memory_space<smem>>, %arg3: memref<6xi32, #tpu.memory_space<smem>>, %arg4: memref<6xi32, #tpu.memory_space<smem>>) -> (i32, i32) {
    %c3_i32 = arith.constant 3 : i32
    %0 = arith.muli %arg0, %c3_i32 : i32
    %1 = arith.addi %0, %arg1 : i32
    %2 = arith.index_cast %1 : i32 to index
    %3 = memref.load %arg2[%2] : memref<6xi32, #tpu.memory_space<smem>>
    %c0_i32 = arith.constant 0 : i32
    %c0_i32_0 = arith.constant 0 : i32
    return %3, %c0_i32 : i32, i32
  }
  func.func @transform_1(%arg0: i32, %arg1: i32, %arg2: memref<6xi32, #tpu.memory_space<smem>>, %arg3: memref<6xi32, #tpu.memory_space<smem>>, %arg4: memref<6xi32, #tpu.memory_space<smem>>) -> (i32, i32) {
    %c3_i32 = arith.constant 3 : i32
    %0 = arith.muli %arg0, %c3_i32 : i32
    %1 = arith.addi %0, %arg1 : i32
    %2 = arith.index_cast %1 : i32 to index
    %3 = memref.load %arg2[%2] : memref<6xi32, #tpu.memory_space<smem>>
    %c0_i32 = arith.constant 0 : i32
    %c0_i32_0 = arith.constant 0 : i32
    return %3, %c0_i32 : i32, i32
  }
  func.func @transform_2(%arg0: i32, %arg1: i32, %arg2: memref<6xi32, #tpu.memory_space<smem>>, %arg3: memref<6xi32, #tpu.memory_space<smem>>, %arg4: memref<6xi32, #tpu.memory_space<smem>>) -> (i32, i32, i32) {
    %c3_i32 = arith.constant 3 : i32
    %0 = arith.muli %arg0, %c3_i32 : i32
    %1 = arith.addi %0, %arg1 : i32
    %2 = arith.index_cast %1 : i32 to index
    %3 = memref.load %arg3[%2] : memref<6xi32, #tpu.memory_space<smem>>
    %c0_i32 = arith.constant 0 : i32
    %c0_i32_0 = arith.constant 0 : i32
    %c0_i32_1 = arith.constant 0 : i32
    return %3, %c0_i32, %c0_i32_0 : i32, i32, i32
  }
  func.func @transform_3(%arg0: i32, %arg1: i32, %arg2: memref<6xi32, #tpu.memory_space<smem>>, %arg3: memref<6xi32, #tpu.memory_space<smem>>, %arg4: memref<6xi32, #tpu.memory_space<smem>>) -> (i32, i32, i32) {
    %c3_i32 = arith.constant 3 : i32
    %0 = arith.muli %arg0, %c3_i32 : i32
    %1 = arith.addi %0, %arg1 : i32
    %2 = arith.index_cast %1 : i32 to index
    %3 = memref.load %arg3[%2] : memref<6xi32, #tpu.memory_space<smem>>
    %c0_i32 = arith.constant 0 : i32
    %c0_i32_0 = arith.constant 0 : i32
    %c0_i32_1 = arith.constant 0 : i32
    return %3, %c0_i32, %c0_i32_0 : i32, i32, i32
  }
  func.func @transform_4(%arg0: i32, %arg1: i32, %arg2: memref<6xi32, #tpu.memory_space<smem>>, %arg3: memref<6xi32, #tpu.memory_space<smem>>, %arg4: memref<6xi32, #tpu.memory_space<smem>>) -> (i32, i32, i32) {
    %c3_i32 = arith.constant 3 : i32
    %0 = arith.muli %arg0, %c3_i32 : i32
    %1 = arith.addi %0, %arg1 : i32
    %2 = arith.index_cast %1 : i32 to index
    %3 = memref.load %arg3[%2] : memref<6xi32, #tpu.memory_space<smem>>
    %c0_i32 = arith.constant 0 : i32
    %c0_i32_0 = arith.constant 0 : i32
    %c0_i32_1 = arith.constant 0 : i32
    return %3, %c0_i32, %c0_i32_0 : i32, i32, i32
  }
}

module attributes {stable_mosaic.version = 11 : i64} {
  func.func @_feat_kernel(%arg0: i32, %arg1: i32, %arg2: memref<6xi32, #tpu.memory_space<smem>>, %arg3: memref<6xi32, #tpu.memory_space<smem>>, %arg4: memref<6xi32, #tpu.memory_space<smem>>, %arg5: memref<8x128xf32, #tpu.memory_space<vmem>>, %arg6: memref<1x8x128xf32, #tpu.memory_space<vmem>>) attributes {dimension_semantics = [#tpu.dimension_semantics<parallel>, #tpu.dimension_semantics<arbitrary>], iteration_bounds = array<i64: 2, 3>, scalar_prefetch = 3 : i64, scratch_operands = 0 : i64, tpu.core_type = #tpu.core_type<tc>, window_params = [{transform_indices = @transform_0, window_bounds = array<i64: 8, 128>}, {transform_indices = @transform_1, window_bounds = array<i64: 1, 8, 128>}]} {
    %c3_i32 = arith.constant 3 : i32
    %0 = arith.muli %arg0, %c3_i32 : i32
    %1 = arith.addi %0, %arg1 : i32
    %2 = arith.index_cast %1 : i32 to index
    %3 = memref.load %arg4[%2] : memref<6xi32, #tpu.memory_space<smem>>
    %c1_i32 = arith.constant 1 : i32
    %4 = arith.cmpi eq, %3, %c1_i32 : i32
    %5 = arith.extui %4 : i1 to i32
    %c0_i32 = arith.constant 0 : i32
    %6 = arith.cmpi ne, %5, %c0_i32 : i32
    scf.if %6 {
      %cst = arith.constant 0.000000e+00 : f32
      %13 = vector.broadcast %cst : f32 to vector<1x8x128xf32>
      %c0_7 = arith.constant 0 : index
      %c0_8 = arith.constant 0 : index
      %c0_9 = arith.constant 0 : index
      %14 = vector.load %arg6[%c0_7, %c0_8, %c0_9] : memref<1x8x128xf32, #tpu.memory_space<vmem>>, vector<1x8x128xf32>
      tpu.vector_store %arg6[%c0_7, %c0_8, %c0_9], %13 {strides = array<i32>} : memref<1x8x128xf32, #tpu.memory_space<vmem>>, vector<1x8x128xf32>,
    } else {
    }
    %c0 = arith.constant 0 : index
    %c0_0 = arith.constant 0 : index
    %c0_1 = arith.constant 0 : index
    %7 = vector.load %arg6[%c0, %c0_0, %c0_1] : memref<1x8x128xf32, #tpu.memory_space<vmem>>, vector<1x8x128xf32>
    %c0_2 = arith.constant 0 : index
    %c0_3 = arith.constant 0 : index
    %8 = vector.load %arg5[%c0_2, %c0_3] : memref<8x128xf32, #tpu.memory_space<vmem>>, vector<8x128xf32>
    %9 = math.absf %8 : vector<8x128xf32>
    %10 = vector.shape_cast %9 : vector<8x128xf32> to vector<1x8x128xf32>
    %11 = arith.addf %7, %10 : vector<1x8x128xf32>
    %c0_4 = arith.constant 0 : index
    %c0_5 = arith.constant 0 : index
    %c0_6 = arith.constant 0 : index
    %12 = vector.load %arg6[%c0_4, %c0_5, %c0_6] : memref<1x8x128xf32, #tpu.memory_space<vmem>>, vector<1x8x128xf32>
    tpu.vector_store %arg6[%c0_4, %c0_5, %c0_6], %11 {strides = array<i32>} : memref<1x8x128xf32, #tpu.memory_space<vmem>>, vector<1x8x128xf32>,
    return
  }
  func.func @transform_0(%arg0: i32, %arg1: i32, %arg2: memref<6xi32, #tpu.memory_space<smem>>, %arg3: memref<6xi32, #tpu.memory_space<smem>>, %arg4: memref<6xi32, #tpu.memory_space<smem>>) -> (i32, i32) {
    %c3_i32 = arith.constant 3 : i32
    %0 = arith.muli %arg0, %c3_i32 : i32
    %1 = arith.addi %0, %arg1 : i32
    %2 = arith.index_cast %1 : i32 to index
    %3 = memref.load %arg2[%2] : memref<6xi32, #tpu.memory_space<smem>>
    %c0_i32 = arith.constant 0 : i32
    %c0_i32_0 = arith.constant 0 : i32
    return %3, %c0_i32 : i32, i32
  }
  func.func @transform_1(%arg0: i32, %arg1: i32, %arg2: memref<6xi32, #tpu.memory_space<smem>>, %arg3: memref<6xi32, #tpu.memory_space<smem>>, %arg4: memref<6xi32, #tpu.memory_space<smem>>) -> (i32, i32, i32) {
    %c3_i32 = arith.constant 3 : i32
    %0 = arith.muli %arg0, %c3_i32 : i32
    %1 = arith.addi %0, %arg1 : i32
    %2 = arith.index_cast %1 : i32 to index
    %3 = memref.load %arg3[%2] : memref<6xi32, #tpu.memory_space<smem>>
    %c0_i32 = arith.constant 0 : i32
    %c0_i32_0 = arith.constant 0 : i32
    %c0_i32_1 = arith.constant 0 : i32
    return %3, %c0_i32, %c0_i32_0 : i32, i32, i32
  }
}

module attributes {stable_mosaic.version = 11 : i64} {
  func.func @_feat_kernel(%arg0: i32, %arg1: i32, %arg2: memref<12xi32, #tpu.memory_space<smem>>, %arg3: memref<12xi32, #tpu.memory_space<smem>>, %arg4: memref<12xi32, #tpu.memory_space<smem>>, %arg5: memref<64x128xf32, #tpu.memory_space<vmem>>, %arg6: memref<1x8x128xf32, #tpu.memory_space<vmem>>) attributes {dimension_semantics = [#tpu.dimension_semantics<parallel>, #tpu.dimension_semantics<arbitrary>], iteration_bounds = array<i64: 2, 6>, scalar_prefetch = 3 : i64, scratch_operands = 0 : i64, tpu.core_type = #tpu.core_type<tc>, window_params = [{transform_indices = @transform_0, window_bounds = array<i64: 64, 128>}, {transform_indices = @transform_1, window_bounds = array<i64: 1, 8, 128>}]} {
    %c6_i32 = arith.constant 6 : i32
    %0 = arith.muli %arg0, %c6_i32 : i32
    %1 = arith.addi %0, %arg1 : i32
    %2 = arith.index_cast %1 : i32 to index
    %3 = memref.load %arg4[%2] : memref<12xi32, #tpu.memory_space<smem>>
    %c1_i32 = arith.constant 1 : i32
    %4 = arith.cmpi eq, %3, %c1_i32 : i32
    %5 = arith.extui %4 : i1 to i32
    %c0_i32 = arith.constant 0 : i32
    %6 = arith.cmpi ne, %5, %c0_i32 : i32
    scf.if %6 {
      %cst = arith.constant 0.000000e+00 : f32
      %28 = vector.broadcast %cst : f32 to vector<1x8x128xf32>
      %c0_7 = arith.constant 0 : index
      %c0_8 = arith.constant 0 : index
      %c0_9 = arith.constant 0 : index
      %29 = vector.load %arg6[%c0_7, %c0_8, %c0_9] : memref<1x8x128xf32, #tpu.memory_space<vmem>>, vector<1x8x128xf32>
      tpu.vector_store %arg6[%c0_7, %c0_8, %c0_9], %28 {strides = array<i32>} : memref<1x8x128xf32, #tpu.memory_space<vmem>>, vector<1x8x128xf32>,
    } else {
    }
    %c0 = arith.constant 0 : index
    %c0_0 = arith.constant 0 : index
    %c0_1 = arith.constant 0 : index
    %7 = vector.load %arg6[%c0, %c0_0, %c0_1] : memref<1x8x128xf32, #tpu.memory_space<vmem>>, vector<1x8x128xf32>
    %c0_2 = arith.constant 0 : index
    %c0_3 = arith.constant 0 : index
    %8 = vector.load %arg5[%c0_2, %c0_3] : memref<64x128xf32, #tpu.memory_space<vmem>>, vector<64x128xf32>
    %9 = math.absf %8 : vector<64x128xf32>
    %10 = vector.extract_strided_slice %9 {offsets = [0, 0], sizes = [8, 128], strides = [1, 1]} : vector<64x128xf32> to vector<8x128xf32>
    %11 = vector.extract_strided_slice %9 {offsets = [8, 0], sizes = [8, 128], strides = [1, 1]} : vector<64x128xf32> to vector<8x128xf32>
    %12 = arith.addf %10, %11 : vector<8x128xf32>
    %13 = vector.extract_strided_slice %9 {offsets = [16, 0], sizes = [8, 128], strides = [1, 1]} : vector<64x128xf32> to vector<8x128xf32>
    %14 = arith.addf %12, %13 : vector<8x128xf32>
    %15 = vector.extract_strided_slice %9 {offsets = [24, 0], sizes = [8, 128], strides = [1, 1]} : vector<64x128xf32> to vector<8x128xf32>
    %16 = arith.addf %14, %15 : vector<8x128xf32>
    %17 = vector.extract_strided_slice %9 {offsets = [32, 0], sizes = [8, 128], strides = [1, 1]} : vector<64x128xf32> to vector<8x128xf32>
    %18 = arith.addf %16, %17 : vector<8x128xf32>
    %19 = vector.extract_strided_slice %9 {offsets = [40, 0], sizes = [8, 128], strides = [1, 1]} : vector<64x128xf32> to vector<8x128xf32>
    %20 = arith.addf %18, %19 : vector<8x128xf32>
    %21 = vector.extract_strided_slice %9 {offsets = [48, 0], sizes = [8, 128], strides = [1, 1]} : vector<64x128xf32> to vector<8x128xf32>
    %22 = arith.addf %20, %21 : vector<8x128xf32>
    %23 = vector.extract_strided_slice %9 {offsets = [56, 0], sizes = [8, 128], strides = [1, 1]} : vector<64x128xf32> to vector<8x128xf32>
    %24 = arith.addf %22, %23 : vector<8x128xf32>
    %25 = vector.shape_cast %24 : vector<8x128xf32> to vector<1x8x128xf32>
    %26 = arith.addf %7, %25 : vector<1x8x128xf32>
    %c0_4 = arith.constant 0 : index
    %c0_5 = arith.constant 0 : index
    %c0_6 = arith.constant 0 : index
    %27 = vector.load %arg6[%c0_4, %c0_5, %c0_6] : memref<1x8x128xf32, #tpu.memory_space<vmem>>, vector<1x8x128xf32>
    tpu.vector_store %arg6[%c0_4, %c0_5, %c0_6], %26 {strides = array<i32>} : memref<1x8x128xf32, #tpu.memory_space<vmem>>, vector<1x8x128xf32>,
    return
  }
  func.func @transform_0(%arg0: i32, %arg1: i32, %arg2: memref<12xi32, #tpu.memory_space<smem>>, %arg3: memref<12xi32, #tpu.memory_space<smem>>, %arg4: memref<12xi32, #tpu.memory_space<smem>>) -> (i32, i32) {
    %c6_i32 = arith.constant 6 : i32
    %0 = arith.muli %arg0, %c6_i32 : i32
    %1 = arith.addi %0, %arg1 : i32
    %2 = arith.index_cast %1 : i32 to index
    %3 = memref.load %arg2[%2] : memref<12xi32, #tpu.memory_space<smem>>
    %c0_i32 = arith.constant 0 : i32
    %c0_i32_0 = arith.constant 0 : i32
    return %3, %c0_i32 : i32, i32
  }
  func.func @transform_1(%arg0: i32, %arg1: i32, %arg2: memref<12xi32, #tpu.memory_space<smem>>, %arg3: memref<12xi32, #tpu.memory_space<smem>>, %arg4: memref<12xi32, #tpu.memory_space<smem>>) -> (i32, i32, i32) {
    %c6_i32 = arith.constant 6 : i32
    %0 = arith.muli %arg0, %c6_i32 : i32
    %1 = arith.addi %0, %arg1 : i32
    %2 = arith.index_cast %1 : i32 to index
    %3 = memref.load %arg3[%2] : memref<12xi32, #tpu.memory_space<smem>>
    %c0_i32 = arith.constant 0 : i32
    %c0_i32_0 = arith.constant 0 : i32
    %c0_i32_1 = arith.constant 0 : i32
    return %3, %c0_i32, %c0_i32_0 : i32, i32, i32
  }
}

</mosaic_0001>

<llo_original>
// kernel: generator_loss.5
$region0: #{generator_loss.5}
  #allocation0 [shape = 'u32[]', space=smem, size = 0x4, offset = 0x4, fixed_abs, tag = 'smem constant byte address 0x4 - core index']
  #allocation1 [shape = 'u32[144,128]{1,0:T(1,128)}', space=vmem, size = 0x12000, scoped, tag = 'internal scratch']
  #allocation2 [shape = 's32[1]{0}', space=sflag, size = 0x4, scoped, tag = 'scoped memory for generator_loss.5']
  #allocation3 [shape = 'u8[512]{0}', space=smem, size = 0x200, scoped, tag = 'prefetched SMEM operand 0']
  #allocation4 [shape = 'u8[512]{0}', space=smem, size = 0x200, scoped, tag = 'prefetched SMEM operand 1']
  #allocation5 [shape = 'u8[512]{0}', space=smem, size = 0x200, scoped, tag = 'prefetched SMEM operand 2']
  %s0 = inlined_call_operand.vmem [shape: s32[6], index: 0, kind: input, shape index: {}, may-alias: {0,1}]
  %s1 = inlined_call_operand.vmem [shape: s32[6], index: 1, kind: input, shape index: {}, may-alias: {0,1}]
  %s2 = inlined_call_operand.vmem [shape: s32[6], index: 2, kind: input, shape index: {}]
  %s3 = inlined_call_operand.vmem [shape: f32[48,128], index: 3, kind: input, shape index: {}]
  %s4 = inlined_call_operand.vmem [shape: f32[48,128], index: 4, kind: input, shape index: {}]
  %s5 = inlined_call_operand.vmem [shape: f32[6,8,128], index: 5, kind: output, shape index: {0}]
  %s6 = inlined_call_operand.vmem [shape: f32[6,8,128], index: 6, kind: output, shape index: {1}]
  %s7 = inlined_call_operand.vmem [shape: f32[6,8,128], index: 7, kind: output, shape index: {2}]
  %8 = xla_tuple %s5, %s6, %s7
  %s9 = sld [smem:[#allocation0]]
  $region61: #{generator_loss.5} parent=0
    _
  %s11 = ssub.s32 1, %s9
  %s12 = scalar_select 0, %s11, %s9
  %s13 = sshll.u32 %s0, 4
  %s14 = int_to_ptr.vmem [resolvable:$true] %s13
  %16 = dma.vmem_to_smem %s14, 16, [#allocation3], [#allocation2]
  %s17 = sshll.u32 %s1, 4
  %s18 = int_to_ptr.vmem [resolvable:$true] %s17
  %20 = dma.vmem_to_smem %s18, 16, [#allocation4], [#allocation2]
  %s21 = sshll.u32 %s2, 4
  %s22 = int_to_ptr.vmem [resolvable:$true] %s21
  %24 = dma.vmem_to_smem %s22, 16, [#allocation5], [#allocation2]
  %25 = dma.done [#allocation2], 48
  %26 = sfence
  loop: start=0, step=1, limit=8
  $region2: #{generator_loss.5} parent=0 // loop_pre_header
    _
  $region3: #{generator_loss.5} parent=0 // loop_header
    %s28 = sphi 0, %s32
    %p29 = scmp.ge.s32.totalorder %s28, 8
    %s35 = sphi 0, %s47
    %s36 = sphi 0, %s43
    %s37 = sphi 0, %s35
    %s38 = sphi 0, %s36
    %s39 = sphi 0, %s37
    %s40 = sphi 0, %s38
    %s56 = sphi 0, %s58
    %s59 = sphi 0, %s56
    %s60 = sphi 0, %s59
    %s76 = sphi 0, %s60
    %s88 = sphi 0, %s90
    %s91 = sphi 0, %s88
    %s92 = sphi 0, %s91
    %s108 = sphi 0, %s92
    %s120 = sphi 0, %s122
    %s123 = sphi 0, %s120
    %s124 = sphi 0, %s123
    %s140 = sphi 0, %s124
    %s152 = sphi 0, %s154
    %s155 = sphi 0, %s152
    %s156 = sphi 0, %s155
    %s172 = sphi 0, %s156
    %s184 = sphi 0, %s186
    %s187 = sphi 0, %s184
    %s188 = sphi 0, %s187
    %s204 = sphi 0, %s188
  $region4: #{generator_loss.5} parent=0 // loop_header_branch
    %31 = sbr.rel (%p29) target = $region8
  $region5: #{generator_loss.5} parent=0 // loop_body
    %s33 = ssub.s32 %s28, 1
    %s34 = ssub.s32 %s28, 2
    %s41 = sadd.s32 1, %s36
    %p42 = scmp.ge.s32.totalorder %s41, 3
    %s43 = scalar_select %p42, 0, %s41
    %s44 = sadd.s32 1, %s35
    %s45 = scalar_select %p42, %s44, %s35
    %p46 = scmp.ge.s32.totalorder %s45, 2
    %s47 = scalar_select %p46, 0, %s45
    %s48 = smul.u32 %s35, 3
    %s49 = sadd.s32 %s48, %s36
    %s50 = sld [smem:[#allocation3 + %s49]]
    %s51 = smul.u32 %s47, 3
    %s52 = sadd.s32 %s51, %s43
    %s53 = sld [smem:[#allocation3 + %s52]]
    %s54 = ssub.s32 %s50, %s53
    %p55 = scmp.eq.s32.totalorder %s54, 0
    %s57 = sadd.s32 %s56, 1
    %s58 = scalar_select %p55, %s56, %s57
    %p61 = pneg %p55
    %p62 = scmp.eq.s32.totalorder %s28, 5
    %p63 = por %p61, %p62
    %p64 = scmp.ne.s32.totalorder %s56, %s59
    %p65 = scmp.eq.s32.totalorder %s28, 0
    %p66 = por %p64, %p65
    %p67 = scmp.ne.s32.totalorder %s56, %s59
    %p68 = scmp.eq.s32.totalorder %s33, 5
    %p69 = por %p67, %p68
    %p70 = scmp.ne.s32.totalorder %s59, %s60
    %p71 = scmp.eq.s32.totalorder %s33, 0
    %p72 = por %p70, %p71
    %p73 = scmp.ne.s32.totalorder %s59, %s60
    %p74 = scmp.eq.s32.totalorder %s34, 5
    %p75 = por %p73, %p74
    %p77 = scmp.ne.s32.totalorder %s60, %s76
    %p78 = scmp.eq.s32.totalorder %s34, 0
    %p79 = por %p77, %p78
    %s80 = smul.u32 %s35, 3
    %s81 = sadd.s32 %s80, %s36
    %s82 = sld [smem:[#allocation3 + %s81]]
    %s83 = smul.u32 %s47, 3
    %s84 = sadd.s32 %s83, %s43
    %s85 = sld [smem:[#allocation3 + %s84]]
    %s86 = ssub.s32 %s82, %s85
    %p87 = scmp.eq.s32.totalorder %s86, 0
    %s89 = sadd.s32 %s88, 1
    %s90 = scalar_select %p87, %s88, %s89
    %p93 = pneg %p87
    %p94 = scmp.eq.s32.totalorder %s28, 5
    %p95 = por %p93, %p94
    %p96 = scmp.ne.s32.totalorder %s88, %s91
    %p97 = scmp.eq.s32.totalorder %s28, 0
    %p98 = por %p96, %p97
    %p99 = scmp.ne.s32.totalorder %s88, %s91
    %p100 = scmp.eq.s32.totalorder %s33, 5
    %p101 = por %p99, %p100
    %p102 = scmp.ne.s32.totalorder %s91, %s92
    %p103 = scmp.eq.s32.totalorder %s33, 0
    %p104 = por %p102, %p103
    %p105 = scmp.ne.s32.totalorder %s91, %s92
    %p106 = scmp.eq.s32.totalorder %s34, 5
    %p107 = por %p105, %p106
    %p109 = scmp.ne.s32.totalorder %s92, %s108
    %p110 = scmp.eq.s32.totalorder %s34, 0
    %p111 = por %p109, %p110
    %s112 = smul.u32 %s35, 3
    %s113 = sadd.s32 %s112, %s36
    %s114 = sld [smem:[#allocation4 + %s113]]
    %s115 = smul.u32 %s47, 3
    %s116 = sadd.s32 %s115, %s43
    %s117 = sld [smem:[#allocation4 + %s116]]
    %s118 = ssub.s32 %s114, %s117
    %p119 = scmp.eq.s32.totalorder %s118, 0
    %s121 = sadd.s32 %s120, 1
    %s122 = scalar_select %p119, %s120, %s121
    %p125 = pneg %p119
    %p126 = scmp.eq.s32.totalorder %s28, 5
    %p127 = por %p125, %p126
    %p128 = scmp.ne.s32.totalorder %s120, %s123
    %p129 = scmp.eq.s32.totalorder %s28, 0
    %p130 = por %p128, %p129
    %p131 = scmp.ne.s32.totalorder %s120, %s123
    %p132 = scmp.eq.s32.totalorder %s33, 5
    %p133 = por %p131, %p132
    %p134 = scmp.ne.s32.totalorder %s123, %s124
    %p135 = scmp.eq.s32.totalorder %s33, 0
    %p136 = por %p134, %p135
    %p137 = scmp.ne.s32.totalorder %s123, %s124
    %p138 = scmp.eq.s32.totalorder %s34, 5
    %p139 = por %p137, %p138
    %p141 = scmp.ne.s32.totalorder %s124, %s140
    %p142 = scmp.eq.s32.totalorder %s34, 0
    %p143 = por %p141, %p142
    %s144 = smul.u32 %s35, 3
    %s145 = sadd.s32 %s144, %s36
    %s146 = sld [smem:[#allocation4 + %s145]]
    %s147 = smul.u32 %s47, 3
    %s148 = sadd.s32 %s147, %s43
    %s149 = sld [smem:[#allocation4 + %s148]]
    %s150 = ssub.s32 %s146, %s149
    %p151 = scmp.eq.s32.totalorder %s150, 0
    %s153 = sadd.s32 %s152, 1
    %s154 = scalar_select %p151, %s152, %s153
    %p157 = pneg %p151
    %p158 = scmp.eq.s32.totalorder %s28, 5
    %p159 = por %p157, %p158
    %p160 = scmp.ne.s32.totalorder %s152, %s155
    %p161 = scmp.eq.s32.totalorder %s28, 0
    %p162 = por %p160, %p161
    %p163 = scmp.ne.s32.totalorder %s152, %s155
    %p164 = scmp.eq.s32.totalorder %s33, 5
    %p165 = por %p163, %p164
    %p166 = scmp.ne.s32.totalorder %s155, %s156
    %p167 = scmp.eq.s32.totalorder %s33, 0
    %p168 = por %p166, %p167
    %p169 = scmp.ne.s32.totalorder %s155, %s156
    %p170 = scmp.eq.s32.totalorder %s34, 5
    %p171 = por %p169, %p170
    %p173 = scmp.ne.s32.totalorder %s156, %s172
    %p174 = scmp.eq.s32.totalorder %s34, 0
    %p175 = por %p173, %p174
    %s176 = smul.u32 %s35, 3
    %s177 = sadd.s32 %s176, %s36
    %s178 = sld [smem:[#allocation4 + %s177]]
    %s179 = smul.u32 %s47, 3
    %s180 = sadd.s32 %s179, %s43
    %s181 = sld [smem:[#allocation4 + %s180]]
    %s182 = ssub.s32 %s178, %s181
    %p183 = scmp.eq.s32.totalorder %s182, 0
    %s185 = sadd.s32 %s184, 1
    %s186 = scalar_select %p183, %s184, %s185
    %p189 = pneg %p183
    %p190 = scmp.eq.s32.totalorder %s28, 5
    %p191 = por %p189, %p190
    %p192 = scmp.ne.s32.totalorder %s184, %s187
    %p193 = scmp.eq.s32.totalorder %s28, 0
    %p194 = por %p192, %p193
    %p195 = scmp.ne.s32.totalorder %s184, %s187
    %p196 = scmp.eq.s32.totalorder %s33, 5
    %p197 = por %p195, %p196
    %p198 = scmp.ne.s32.totalorder %s187, %s188
    %p199 = scmp.eq.s32.totalorder %s33, 0
    %p200 = por %p198, %p199
    %p201 = scmp.ne.s32.totalorder %s187, %s188
    %p202 = scmp.eq.s32.totalorder %s34, 5
    %p203 = por %p201, %p202
    %p205 = scmp.ne.s32.totalorder %s188, %s204
    %p206 = scmp.eq.s32.totalorder %s34, 0
    %p207 = por %p205, %p206
    %p208 = scmp.le.s32.totalorder 1, %s28
    %p209 = scmp.lt.s32.totalorder %s28, 7
    %p210 = pnand %p208, %p209
    %p211 = pneg %p210
    // Predicated region
    $region9: #{generator_loss.5} parent=5 // pred_check
      _
    $region10: #{generator_loss.5} parent=5 // pred_check_branch
      %213 = sbr.rel (%p210) target = $region12
    $region11: #{generator_loss.5} parent=5 // pred_region
      %s214 = ssub.s32 %s28, 1
    $region12: #{generator_loss.5} parent=5 // pred_fallthru
      _
    %p215 = scmp.lt.s32.totalorder %s28, 6
    // Predicated region
    $region13: #{generator_loss.5} parent=5 // pred_check
      %p216 = pneg %p215
    $region14: #{generator_loss.5} parent=5 // pred_check_branch
      %218 = sbr.rel (%p216) target = $region16
    $region15: #{generator_loss.5} parent=5 // pred_region
      // Predicated region
      $region17: #{generator_loss.5} parent=15 // pred_check
        %p219 = pneg %p66
      $region18: #{generator_loss.5} parent=15 // pred_check_branch
        %221 = sbr.rel (%p219) target = $region20
      $region19: #{generator_loss.5} parent=15 // pred_region
        %s222 = smul.u32 %s35, 3
        %s223 = sadd.s32 %s222, %s36
        %s224 = sld [smem:[#allocation3 + %s223]]
        %p225 = scmp.lt.s32.totalorder %s224, 5
        %s226 = scalar_select %p225, %s224, 5
        %s227 = smul.addr %s226, 8
        %s228 = scalar_lea.vmem %s3, %s227
        %s229 = smul.u32 %s35, 3
        %s230 = sadd.s32 %s229, %s36
        %s231 = sld [smem:[#allocation3 + %s230]]
      $region20: #{generator_loss.5} parent=15 // pred_fallthru
        _
      // Predicated region
      $region21: #{generator_loss.5} parent=15 // pred_check
        %p232 = pneg %p98
      $region22: #{generator_loss.5} parent=15 // pred_check_branch
        %234 = sbr.rel (%p232) target = $region24
      $region23: #{generator_loss.5} parent=15 // pred_region
        %s235 = smul.u32 %s35, 3
        %s236 = sadd.s32 %s235, %s36
        %s237 = sld [smem:[#allocation3 + %s236]]
        %p238 = scmp.lt.s32.totalorder %s237, 5
        %s239 = scalar_select %p238, %s237, 5
        %s240 = smul.addr %s239, 8
        %s241 = scalar_lea.vmem %s4, %s240
        %s242 = smul.u32 %s35, 3
        %s243 = sadd.s32 %s242, %s36
        %s244 = sld [smem:[#allocation3 + %s243]]
      $region24: #{generator_loss.5} parent=15 // pred_fallthru
        _
    $region16: #{generator_loss.5} parent=5 // pred_fallthru
      _
    %p245 = scmp.le.s32.totalorder 1, %s28
    %p246 = scmp.lt.s32.totalorder %s28, 7
    %p247 = pnand %p245, %p246
    %p248 = pneg %p247
    // Predicated region
    $region25: #{generator_loss.5} parent=5 // pred_check
      _
    $region26: #{generator_loss.5} parent=5 // pred_check_branch
      %250 = sbr.rel (%p247) target = $region28
    $region27: #{generator_loss.5} parent=5 // pred_region
      %s251 = ssub.s32 %s28, 1
      %s252 = smul.u32 %s37, 3
      %s253 = sadd.s32 %s252, %s38
      %s254 = sld [smem:[#allocation3 + %s253]]
      %p255 = scmp.lt.s32.totalorder %s254, 5
      %s256 = scalar_select %p255, %s254, 5
      %s257 = smul.addr %s256, 8
      %s258 = scalar_lea.vmem %s3, %s257
      %p259 = pneg %p72
      %p260 = pneg %p69
      %s261 = smul.u32 %s37, 3
      %s262 = sadd.s32 %s261, %s38
      %s263 = sld [smem:[#allocation3 + %s262]]
      %p264 = scmp.lt.s32.totalorder %s263, 5
      %s265 = scalar_select %p264, %s263, 5
      %s266 = smul.addr %s265, 8
      %s267 = scalar_lea.vmem %s4, %s266
      %p268 = pneg %p104
      %p269 = pneg %p101
      %p270 = pneg %p136
      %p271 = pneg %p133
      %s272 = smul.u32 %s37, 3
      %s273 = sadd.s32 %s272, %s38
      %s274 = sld [smem:[#allocation4 + %s273]]
      %p275 = scmp.lt.s32.totalorder %s274, 5
      %s276 = scalar_select %p275, %s274, 5
      %s277 = smul.addr %s276, 8
      %s278 = scalar_lea.vmem %s5, %s277
      %p279 = pneg %p168
      %p280 = pneg %p165
      %s281 = smul.u32 %s37, 3
      %s282 = sadd.s32 %s281, %s38
      %s283 = sld [smem:[#allocation4 + %s282]]
      %p284 = scmp.lt.s32.totalorder %s283, 5
      %s285 = scalar_select %p284, %s283, 5
      %s286 = smul.addr %s285, 8
      %s287 = scalar_lea.vmem %s6, %s286
      %p288 = pneg %p200
      %p289 = pneg %p197
      %s290 = smul.u32 %s37, 3
      %s291 = sadd.s32 %s290, %s38
      %s292 = sld [smem:[#allocation4 + %s291]]
      %p293 = scmp.lt.s32.totalorder %s292, 5
      %s294 = scalar_select %p293, %s292, 5
      %s295 = smul.addr %s294, 8
      %s296 = scalar_lea.vmem %s7, %s295
      %s297 = smul.u32 %s37, 3
      %s298 = sadd.s32 %s297, %s38
      %s299 = sld [smem:[#allocation3 + %s298]]
      %p300 = scmp.lt.s32.totalorder %s299, 5
      %s301 = scalar_select %p300, %s299, 5
      %s302 = smul.addr %s301, 8
      %s303 = scalar_lea.vmem %s3, %s302
      %s304 = smul.u32 %s37, 3
      %s305 = sadd.s32 %s304, %s38
      %s306 = sld [smem:[#allocation3 + %s305]]
      %s307 = smul.u32 %s37, 3
      %s308 = sadd.s32 %s307, %s38
      %s309 = sld [smem:[#allocation3 + %s308]]
      %p310 = scmp.lt.s32.totalorder %s309, 5
      %s311 = scalar_select %p310, %s309, 5
      %s312 = smul.addr %s311, 8
      %s313 = scalar_lea.vmem %s4, %s312
      %s314 = smul.u32 %s37, 3
      %s315 = sadd.s32 %s314, %s38
      %s316 = sld [smem:[#allocation3 + %s315]]
      %s317 = smul.u32 %s37, 3
      %s318 = sadd.s32 %s317, %s38
      %s319 = sld [smem:[#allocation4 + %s318]]
      %p320 = scmp.lt.s32.totalorder %s319, 5
      %s321 = scalar_select %p320, %s319, 5
      %s322 = smul.addr %s321, 8
      %s323 = scalar_lea.vmem %s5, %s322
      %s324 = smul.u32 %s37, 3
      %s325 = sadd.s32 %s324, %s38
      %s326 = sld [smem:[#allocation4 + %s325]]
      %s327 = smul.u32 %s37, 3
      %s328 = sadd.s32 %s327, %s38
      %s329 = sld [smem:[#allocation4 + %s328]]
      %p330 = scmp.lt.s32.totalorder %s329, 5
      %s331 = scalar_select %p330, %s329, 5
      %s332 = smul.addr %s331, 8
      %s333 = scalar_lea.vmem %s6, %s332
      %s334 = smul.u32 %s37, 3
      %s335 = sadd.s32 %s334, %s38
      %s336 = sld [smem:[#allocation4 + %s335]]
      %s337 = smul.u32 %s37, 3
      %s338 = sadd.s32 %s337, %s38
      %s339 = sld [smem:[#allocation4 + %s338]]
      %p340 = scmp.lt.s32.totalorder %s339, 5
      %s341 = scalar_select %p340, %s339, 5
      %s342 = smul.addr %s341, 8
      %s343 = scalar_lea.vmem %s7, %s342
      %s344 = smul.u32 %s37, 3
      %s345 = sadd.s32 %s344, %s38
      %s346 = sld [smem:[#allocation4 + %s345]]
      %s347 = smul.u32 %s37, 3
      %s348 = sadd.s32 %s347, %s38
      %s349 = sld [smem:[#allocation5 + %s348]]
      %p350 = scmp.eq.s32.totalorder %s349, 1
      // Predicated region
      $region29: #{generator_loss.5} parent=27 // pred_check
        %p351 = pneg %p350
      $region30: #{generator_loss.5} parent=27 // pred_check_branch
        %353 = sbr.rel (%p351) target = $region32
      $region31: #{generator_loss.5} parent=27 // pred_region
        %354 = vst [vmem:[%s323] sm:$0xff] 0.0
        %355 = vst [vmem:[%s333] sm:$0xff] 0.0
        %356 = vst [vmem:[%s343] sm:$0xff] 0.0
      $region32: #{generator_loss.5} parent=27 // pred_fallthru
        _
      %v357 = vld [vmem:[%s313] sm:$0xff]
      %v358 = vsub.f32 1.0, %v357
      %v359 = vld [vmem:[%s323] sm:$0xff]
      %v360 = vmul.f32 %v358, %v358
      %v361 = vadd.f32 %v359, %v360
      %362 = vst [vmem:[%s323] sm:$0xff] %v361
      %v363 = vld [vmem:[%s303] sm:$0xff]
      %v364 = vsub.f32 %v357, %v363
      %vm365 = vcmp.lt.f32.partialorder %v364, 0.0
      %v366 = vsel %vm365, %v364, 0.0
      %v367 = vld [vmem:[%s333] sm:$0xff]
      %v368 = vmul.f32 %v366, %v366
      %v369 = vadd.f32 %v367, %v368
      %370 = vst [vmem:[%s333] sm:$0xff] %v369
      %v371 = vld [vmem:[%s343] sm:$0xff]
      %v372 = vsel %vm365, 1.0, 0.0
      %v373 = vadd.f32 %v371, %v372
      %374 = vst [vmem:[%s343] sm:$0xff] %v373
      %s375 = smul.u32 %s37, 3
      %s376 = sadd.s32 %s375, %s38
      %s377 = sld [smem:[#allocation4 + %s376]]
      %p378 = scmp.lt.s32.totalorder %s377, 5
      %s379 = scalar_select %p378, %s377, 5
      %s380 = smul.addr %s379, 8
      %s381 = scalar_lea.vmem %s5, %s380
      %s382 = smul.u32 %s37, 3
      %s383 = sadd.s32 %s382, %s38
      %s384 = sld [smem:[#allocation4 + %s383]]
      %p385 = scmp.lt.s32.totalorder %s384, 5
      %s386 = scalar_select %p385, %s384, 5
      %s387 = smul.addr %s386, 8
      %s388 = scalar_lea.vmem %s6, %s387
      %s389 = smul.u32 %s37, 3
      %s390 = sadd.s32 %s389, %s38
      %s391 = sld [smem:[#allocation4 + %s390]]
      %p392 = scmp.lt.s32.totalorder %s391, 5
      %s393 = scalar_select %p392, %s391, 5
      %s394 = smul.addr %s393, 8
      %s395 = scalar_lea.vmem %s7, %s394
      // Predicated region
      $region33: #{generator_loss.5} parent=27 // pred_check
        %p396 = pneg %p133
      $region34: #{generator_loss.5} parent=27 // pred_check_branch
        %398 = sbr.rel (%p396) target = $region36
      $region35: #{generator_loss.5} parent=27 // pred_region
        %s399 = smul.u32 %s37, 3
        %s400 = sadd.s32 %s399, %s38
        %s401 = sld [smem:[#allocation4 + %s400]]
      $region36: #{generator_loss.5} parent=27 // pred_fallthru
        _
      // Predicated region
      $region37: #{generator_loss.5} parent=27 // pred_check
        %p402 = pneg %p165
      $region38: #{generator_loss.5} parent=27 // pred_check_branch
        %404 = sbr.rel (%p402) target = $region40
      $region39: #{generator_loss.5} parent=27 // pred_region
        %s405 = smul.u32 %s37, 3
        %s406 = sadd.s32 %s405, %s38
        %s407 = sld [smem:[#allocation4 + %s406]]
      $region40: #{generator_loss.5} parent=27 // pred_fallthru
        _
      // Predicated region
      $region41: #{generator_loss.5} parent=27 // pred_check
        %p408 = pneg %p197
      $region42: #{generator_loss.5} parent=27 // pred_check_branch
        %410 = sbr.rel (%p408) target = $region44
      $region43: #{generator_loss.5} parent=27 // pred_region
        %s411 = smul.u32 %s37, 3
        %s412 = sadd.s32 %s411, %s38
        %s413 = sld [smem:[#allocation4 + %s412]]
      $region44: #{generator_loss.5} parent=27 // pred_fallthru
        _
    $region28: #{generator_loss.5} parent=5 // pred_fallthru
      _
    %p414 = scmp.le.s32.totalorder 2, %s28
    // Predicated region
    $region45: #{generator_loss.5} parent=5 // pred_check
      %p415 = pneg %p414
    $region46: #{generator_loss.5} parent=5 // pred_check_branch
      %417 = sbr.rel (%p415) target = $region48
    $region47: #{generator_loss.5} parent=5 // pred_region
      %s418 = ssub.s32 %s28, 2
      // Predicated region
      $region49: #{generator_loss.5} parent=47 // pred_check
        %p419 = pneg %p139
      $region50: #{generator_loss.5} parent=47 // pred_check_branch
        %421 = sbr.rel (%p419) target = $region52
      $region51: #{generator_loss.5} parent=47 // pred_region
        %s422 = smul.u32 %s39, 3
        %s423 = sadd.s32 %s422, %s40
        %s424 = sld [smem:[#allocation4 + %s423]]
        %p425 = scmp.lt.s32.totalorder %s424, 5
        %s426 = scalar_select %p425, %s424, 5
        %s427 = smul.addr %s426, 8
        %s428 = scalar_lea.vmem %s5, %s427
      $region52: #{generator_loss.5} parent=47 // pred_fallthru
        _
      // Predicated region
      $region53: #{generator_loss.5} parent=47 // pred_check
        %p429 = pneg %p171
      $region54: #{generator_loss.5} parent=47 // pred_check_branch
        %431 = sbr.rel (%p429) target = $region56
      $region55: #{generator_loss.5} parent=47 // pred_region
        %s432 = smul.u32 %s39, 3
        %s433 = sadd.s32 %s432, %s40
        %s434 = sld [smem:[#allocation4 + %s433]]
        %p435 = scmp.lt.s32.totalorder %s434, 5
        %s436 = scalar_select %p435, %s434, 5
        %s437 = smul.addr %s436, 8
        %s438 = scalar_lea.vmem %s6, %s437
      $region56: #{generator_loss.5} parent=47 // pred_fallthru
        _
      // Predicated region
      $region57: #{generator_loss.5} parent=47 // pred_check
        %p439 = pneg %p203
      $region58: #{generator_loss.5} parent=47 // pred_check_branch
        %441 = sbr.rel (%p439) target = $region60
      $region59: #{generator_loss.5} parent=47 // pred_region
        %s442 = smul.u32 %s39, 3
        %s443 = sadd.s32 %s442, %s40
        %s444 = sld [smem:[#allocation4 + %s443]]
        %p445 = scmp.lt.s32.totalorder %s444, 5
        %s446 = scalar_select %p445, %s444, 5
        %s447 = smul.addr %s446, 8
        %s448 = scalar_lea.vmem %s7, %s447
      $region60: #{generator_loss.5} parent=47 // pred_fallthru
        _
    $region48: #{generator_loss.5} parent=5 // pred_fallthru
      _
  $region6: #{generator_loss.5} parent=0 // loop_footer
    %s32 = sadd.s32 1, %s28
  $region7: #{generator_loss.5} parent=0 // loop_footer_branch
    %27 = sbr.rel target = $region3
  $region8: #{generator_loss.5} parent=0 // loop_exit
    _

// kernel: generator_loss.4
$region0: #{generator_loss.4}
  #allocation0 [shape = 'u32[]', space=smem, size = 0x4, offset = 0x4, fixed_abs, tag = 'smem constant byte address 0x4 - core index']
  #allocation1 [shape = 'u32[144,128]{1,0:T(1,128)}', space=vmem, size = 0x12000, scoped, tag = 'internal scratch']
  #allocation2 [shape = 's32[1]{0}', space=sflag, size = 0x4, scoped, tag = 'scoped memory for generator_loss.4']
  #allocation3 [shape = 'u8[512]{0}', space=smem, size = 0x200, scoped, tag = 'prefetched SMEM operand 0']
  #allocation4 [shape = 'u8[512]{0}', space=smem, size = 0x200, scoped, tag = 'prefetched SMEM operand 1']
  #allocation5 [shape = 'u8[512]{0}', space=smem, size = 0x200, scoped, tag = 'prefetched SMEM operand 2']
  %s0 = inlined_call_operand.vmem [shape: s32[6], index: 0, kind: input, shape index: {}, may-alias: {0,1}]
  %s1 = inlined_call_operand.vmem [shape: s32[6], index: 1, kind: input, shape index: {}, may-alias: {0,1}]
  %s2 = inlined_call_operand.vmem [shape: s32[6], index: 2, kind: input, shape index: {}]
  %s3 = inlined_call_operand.vmem [shape: f32[48,128], index: 3, kind: input, shape index: {}]
  %s4 = inlined_call_operand.vmem [shape: f32[6,8,128], index: 4, kind: output, shape index: {}]
  %s5 = sld [smem:[#allocation0]]
  $region41: #{generator_loss.4} parent=0
    _
  %s7 = ssub.s32 1, %s5
  %s8 = scalar_select 0, %s7, %s5
  %s9 = sshll.u32 %s0, 4
  %s10 = int_to_ptr.vmem [resolvable:$true] %s9
  %12 = dma.vmem_to_smem %s10, 16, [#allocation3], [#allocation2]
  %s13 = sshll.u32 %s1, 4
  %s14 = int_to_ptr.vmem [resolvable:$true] %s13
  %16 = dma.vmem_to_smem %s14, 16, [#allocation4], [#allocation2]
  %s17 = sshll.u32 %s2, 4
  %s18 = int_to_ptr.vmem [resolvable:$true] %s17
  %20 = dma.vmem_to_smem %s18, 16, [#allocation5], [#allocation2]
  %21 = dma.done [#allocation2], 48
  %22 = sfence
  loop: start=0, step=1, limit=8
  $region2: #{generator_loss.4} parent=0 // loop_pre_header
    _
  $region3: #{generator_loss.4} parent=0 // loop_header
    %s24 = sphi 0, %s28
    %p25 = scmp.ge.s32.totalorder %s24, 8
    %s31 = sphi 0, %s43
    %s32 = sphi 0, %s39
    %s33 = sphi 0, %s31
    %s34 = sphi 0, %s32
    %s35 = sphi 0, %s33
    %s36 = sphi 0, %s34
    %s52 = sphi 0, %s54
    %s55 = sphi 0, %s52
    %s56 = sphi 0, %s55
    %s72 = sphi 0, %s56
    %s84 = sphi 0, %s86
    %s87 = sphi 0, %s84
    %s88 = sphi 0, %s87
    %s104 = sphi 0, %s88
  $region4: #{generator_loss.4} parent=0 // loop_header_branch
    %27 = sbr.rel (%p25) target = $region8
  $region5: #{generator_loss.4} parent=0 // loop_body
    %s29 = ssub.s32 %s24, 1
    %s30 = ssub.s32 %s24, 2
    %s37 = sadd.s32 1, %s32
    %p38 = scmp.ge.s32.totalorder %s37, 3
    %s39 = scalar_select %p38, 0, %s37
    %s40 = sadd.s32 1, %s31
    %s41 = scalar_select %p38, %s40, %s31
    %p42 = scmp.ge.s32.totalorder %s41, 2
    %s43 = scalar_select %p42, 0, %s41
    %s44 = smul.u32 %s31, 3
    %s45 = sadd.s32 %s44, %s32
    %s46 = sld [smem:[#allocation3 + %s45]]
    %s47 = smul.u32 %s43, 3
    %s48 = sadd.s32 %s47, %s39
    %s49 = sld [smem:[#allocation3 + %s48]]
    %s50 = ssub.s32 %s46, %s49
    %p51 = scmp.eq.s32.totalorder %s50, 0
    %s53 = sadd.s32 %s52, 1
    %s54 = scalar_select %p51, %s52, %s53
    %p57 = pneg %p51
    %p58 = scmp.eq.s32.totalorder %s24, 5
    %p59 = por %p57, %p58
    %p60 = scmp.ne.s32.totalorder %s52, %s55
    %p61 = scmp.eq.s32.totalorder %s24, 0
    %p62 = por %p60, %p61
    %p63 = scmp.ne.s32.totalorder %s52, %s55
    %p64 = scmp.eq.s32.totalorder %s29, 5
    %p65 = por %p63, %p64
    %p66 = scmp.ne.s32.totalorder %s55, %s56
    %p67 = scmp.eq.s32.totalorder %s29, 0
    %p68 = por %p66, %p67
    %p69 = scmp.ne.s32.totalorder %s55, %s56
    %p70 = scmp.eq.s32.totalorder %s30, 5
    %p71 = por %p69, %p70
    %p73 = scmp.ne.s32.totalorder %s56, %s72
    %p74 = scmp.eq.s32.totalorder %s30, 0
    %p75 = por %p73, %p74
    %s76 = smul.u32 %s31, 3
    %s77 = sadd.s32 %s76, %s32
    %s78 = sld [smem:[#allocation4 + %s77]]
    %s79 = smul.u32 %s43, 3
    %s80 = sadd.s32 %s79, %s39
    %s81 = sld [smem:[#allocation4 + %s80]]
    %s82 = ssub.s32 %s78, %s81
    %p83 = scmp.eq.s32.totalorder %s82, 0
    %s85 = sadd.s32 %s84, 1
    %s86 = scalar_select %p83, %s84, %s85
    %p89 = pneg %p83
    %p90 = scmp.eq.s32.totalorder %s24, 5
    %p91 = por %p89, %p90
    %p92 = scmp.ne.s32.totalorder %s84, %s87
    %p93 = scmp.eq.s32.totalorder %s24, 0
    %p94 = por %p92, %p93
    %p95 = scmp.ne.s32.totalorder %s84, %s87
    %p96 = scmp.eq.s32.totalorder %s29, 5
    %p97 = por %p95, %p96
    %p98 = scmp.ne.s32.totalorder %s87, %s88
    %p99 = scmp.eq.s32.totalorder %s29, 0
    %p100 = por %p98, %p99
    %p101 = scmp.ne.s32.totalorder %s87, %s88
    %p102 = scmp.eq.s32.totalorder %s30, 5
    %p103 = por %p101, %p102
    %p105 = scmp.ne.s32.totalorder %s88, %s104
    %p106 = scmp.eq.s32.totalorder %s30, 0
    %p107 = por %p105, %p106
    %p108 = scmp.le.s32.totalorder 1, %s24
    %p109 = scmp.lt.s32.totalorder %s24, 7
    %p110 = pnand %p108, %p109
    %p111 = pneg %p110
    // Predicated region
    $region9: #{generator_loss.4} parent=5 // pred_check
      _
    $region10: #{generator_loss.4} parent=5 // pred_check_branch
      %113 = sbr.rel (%p110) target = $region12
    $region11: #{generator_loss.4} parent=5 // pred_region
      %s114 = ssub.s32 %s24, 1
    $region12: #{generator_loss.4} parent=5 // pred_fallthru
      _
    %p115 = scmp.lt.s32.totalorder %s24, 6
    // Predicated region
    $region13: #{generator_loss.4} parent=5 // pred_check
      %p116 = pneg %p115
    $region14: #{generator_loss.4} parent=5 // pred_check_branch
      %118 = sbr.rel (%p116) target = $region16
    $region15: #{generator_loss.4} parent=5 // pred_region
      // Predicated region
      $region17: #{generator_loss.4} parent=15 // pred_check
        %p119 = pneg %p62
      $region18: #{generator_loss.4} parent=15 // pred_check_branch
        %121 = sbr.rel (%p119) target = $region20
      $region19: #{generator_loss.4} parent=15 // pred_region
        %s122 = smul.u32 %s31, 3
        %s123 = sadd.s32 %s122, %s32
        %s124 = sld [smem:[#allocation3 + %s123]]
        %p125 = scmp.lt.s32.totalorder %s124, 5
        %s126 = scalar_select %p125, %s124, 5
        %s127 = smul.addr %s126, 8
        %s128 = scalar_lea.vmem %s3, %s127
        %s129 = smul.u32 %s31, 3
        %s130 = sadd.s32 %s129, %s32
        %s131 = sld [smem:[#allocation3 + %s130]]
      $region20: #{generator_loss.4} parent=15 // pred_fallthru
        _
    $region16: #{generator_loss.4} parent=5 // pred_fallthru
      _
    %p132 = scmp.le.s32.totalorder 1, %s24
    %p133 = scmp.lt.s32.totalorder %s24, 7
    %p134 = pnand %p132, %p133
    %p135 = pneg %p134
    // Predicated region
    $region21: #{generator_loss.4} parent=5 // pred_check
      _
    $region22: #{generator_loss.4} parent=5 // pred_check_branch
      %137 = sbr.rel (%p134) target = $region24
    $region23: #{generator_loss.4} parent=5 // pred_region
      %s138 = ssub.s32 %s24, 1
      %s139 = smul.u32 %s33, 3
      %s140 = sadd.s32 %s139, %s34
      %s141 = sld [smem:[#allocation3 + %s140]]
      %p142 = scmp.lt.s32.totalorder %s141, 5
      %s143 = scalar_select %p142, %s141, 5
      %s144 = smul.addr %s143, 8
      %s145 = scalar_lea.vmem %s3, %s144
      %p146 = pneg %p68
      %p147 = pneg %p65
      %p148 = pneg %p100
      %p149 = pneg %p97
      %s150 = smul.u32 %s33, 3
      %s151 = sadd.s32 %s150, %s34
      %s152 = sld [smem:[#allocation4 + %s151]]
      %p153 = scmp.lt.s32.totalorder %s152, 5
      %s154 = scalar_select %p153, %s152, 5
      %s155 = smul.addr %s154, 8
      %s156 = scalar_lea.vmem %s4, %s155
      %s157 = smul.u32 %s33, 3
      %s158 = sadd.s32 %s157, %s34
      %s159 = sld [smem:[#allocation3 + %s158]]
      %p160 = scmp.lt.s32.totalorder %s159, 5
      %s161 = scalar_select %p160, %s159, 5
      %s162 = smul.addr %s161, 8
      %s163 = scalar_lea.vmem %s3, %s162
      %s164 = smul.u32 %s33, 3
      %s165 = sadd.s32 %s164, %s34
      %s166 = sld [smem:[#allocation3 + %s165]]
      %s167 = smul.u32 %s33, 3
      %s168 = sadd.s32 %s167, %s34
      %s169 = sld [smem:[#allocation4 + %s168]]
      %p170 = scmp.lt.s32.totalorder %s169, 5
      %s171 = scalar_select %p170, %s169, 5
      %s172 = smul.addr %s171, 8
      %s173 = scalar_lea.vmem %s4, %s172
      %s174 = smul.u32 %s33, 3
      %s175 = sadd.s32 %s174, %s34
      %s176 = sld [smem:[#allocation4 + %s175]]
      %s177 = smul.u32 %s33, 3
      %s178 = sadd.s32 %s177, %s34
      %s179 = sld [smem:[#allocation5 + %s178]]
      %p180 = scmp.eq.s32.totalorder %s179, 1
      // Predicated region
      $region25: #{generator_loss.4} parent=23 // pred_check
        %p181 = pneg %p180
      $region26: #{generator_loss.4} parent=23 // pred_check_branch
        %183 = sbr.rel (%p181) target = $region28
      $region27: #{generator_loss.4} parent=23 // pred_region
        %184 = vst [vmem:[%s173] sm:$0xff] 0.0
      $region28: #{generator_loss.4} parent=23 // pred_fallthru
        _
      %v185 = vld [vmem:[%s173] sm:$0xff]
      %v186 = vld [vmem:[%s163] sm:$0xff]
      %v187 = vand.u32 2147483647, %v186
      %v188 = vadd.f32 %v185, %v187
      %189 = vst [vmem:[%s173] sm:$0xff] %v188
      %s190 = smul.u32 %s33, 3
      %s191 = sadd.s32 %s190, %s34
      %s192 = sld [smem:[#allocation4 + %s191]]
      %p193 = scmp.lt.s32.totalorder %s192, 5
      %s194 = scalar_select %p193, %s192, 5
      %s195 = smul.addr %s194, 8
      %s196 = scalar_lea.vmem %s4, %s195
      // Predicated region
      $region29: #{generator_loss.4} parent=23 // pred_check
        %p197 = pneg %p97
      $region30: #{generator_loss.4} parent=23 // pred_check_branch
        %199 = sbr.rel (%p197) target = $region32
      $region31: #{generator_loss.4} parent=23 // pred_region
        %s200 = smul.u32 %s33, 3
        %s201 = sadd.s32 %s200, %s34
        %s202 = sld [smem:[#allocation4 + %s201]]
      $region32: #{generator_loss.4} parent=23 // pred_fallthru
        _
    $region24: #{generator_loss.4} parent=5 // pred_fallthru
      _
    %p203 = scmp.le.s32.totalorder 2, %s24
    // Predicated region
    $region33: #{generator_loss.4} parent=5 // pred_check
      %p204 = pneg %p203
    $region34: #{generator_loss.4} parent=5 // pred_check_branch
      %206 = sbr.rel (%p204) target = $region36
    $region35: #{generator_loss.4} parent=5 // pred_region
      %s207 = ssub.s32 %s24, 2
      // Predicated region
      $region37: #{generator_loss.4} parent=35 // pred_check
        %p208 = pneg %p103
      $region38: #{generator_loss.4} parent=35 // pred_check_branch
        %210 = sbr.rel (%p208) target = $region40
      $region39: #{generator_loss.4} parent=35 // pred_region
        %s211 = smul.u32 %s35, 3
        %s212 = sadd.s32 %s211, %s36
        %s213 = sld [smem:[#allocation4 + %s212]]
        %p214 = scmp.lt.s32.totalorder %s213, 5
        %s215 = scalar_select %p214, %s213, 5
        %s216 = smul.addr %s215, 8
        %s217 = scalar_lea.vmem %s4, %s216
      $region40: #{generator_loss.4} parent=35 // pred_fallthru
        _
    $region36: #{generator_loss.4} parent=5 // pred_fallthru
      _
  $region6: #{generator_loss.4} parent=0 // loop_footer
    %s28 = sadd.s32 1, %s24
  $region7: #{generator_loss.4} parent=0 // loop_footer_branch
    %23 = sbr.rel target = $region3
  $region8: #{generator_loss.4} parent=0 // loop_exit
    _

// kernel: generator_loss.3
$region0: #{generator_loss.3}
  #allocation0 [shape = 'u32[]', space=smem, size = 0x4, offset = 0x4, fixed_abs, tag = 'smem constant byte address 0x4 - core index']
  #allocation1 [shape = 'u32[144,128]{1,0:T(1,128)}', space=vmem, size = 0x12000, scoped, tag = 'internal scratch']
  #allocation2 [shape = 's32[1]{0}', space=sflag, size = 0x4, scoped, tag = 'scoped memory for generator_loss.3']
  #allocation3 [shape = 'u8[512]{0}', space=smem, size = 0x200, scoped, tag = 'prefetched SMEM operand 0']
  #allocation4 [shape = 'u8[512]{0}', space=smem, size = 0x200, scoped, tag = 'prefetched SMEM operand 1']
  #allocation5 [shape = 'u8[512]{0}', space=smem, size = 0x200, scoped, tag = 'prefetched SMEM operand 2']
  %s0 = inlined_call_operand.vmem [shape: s32[12], index: 0, kind: input, shape index: {}, may-alias: {0,1}]
  %s1 = inlined_call_operand.vmem [shape: s32[12], index: 1, kind: input, shape index: {}, may-alias: {0,1}]
  %s2 = inlined_call_operand.vmem [shape: s32[12], index: 2, kind: input, shape index: {}]
  %s3 = inlined_call_operand.vmem [shape: f32[768,128], index: 3, kind: input, shape index: {}]
  %s4 = inlined_call_operand.vmem [shape: f32[12,8,128], index: 4, kind: output, shape index: {}]
  %s5 = sld [smem:[#allocation0]]
  $region41: #{generator_loss.3} parent=0
    _
  %s7 = ssub.s32 1, %s5
  %s8 = scalar_select 0, %s7, %s5
  %s9 = sshll.u32 %s0, 4
  %s10 = int_to_ptr.vmem [resolvable:$true] %s9
  %12 = dma.vmem_to_smem %s10, 16, [#allocation3], [#allocation2]
  %s13 = sshll.u32 %s1, 4
  %s14 = int_to_ptr.vmem [resolvable:$true] %s13
  %16 = dma.vmem_to_smem %s14, 16, [#allocation4], [#allocation2]
  %s17 = sshll.u32 %s2, 4
  %s18 = int_to_ptr.vmem [resolvable:$true] %s17
  %20 = dma.vmem_to_smem %s18, 16, [#allocation5], [#allocation2]
  %21 = dma.done [#allocation2], 48
  %22 = sfence
  loop: start=0, step=1, limit=14
  $region2: #{generator_loss.3} parent=0 // loop_pre_header
    _
  $region3: #{generator_loss.3} parent=0 // loop_header
    %s24 = sphi 0, %s28
    %p25 = scmp.ge.s32.totalorder %s24, 14
    %s31 = sphi 0, %s43
    %s32 = sphi 0, %s39
    %s33 = sphi 0, %s31
    %s34 = sphi 0, %s32
    %s35 = sphi 0, %s33
    %s36 = sphi 0, %s34
    %s52 = sphi 0, %s54
    %s55 = sphi 0, %s52
    %s56 = sphi 0, %s55
    %s72 = sphi 0, %s56
    %s84 = sphi 0, %s86
    %s87 = sphi 0, %s84
    %s88 = sphi 0, %s87
    %s104 = sphi 0, %s88
  $region4: #{generator_loss.3} parent=0 // loop_header_branch
    %27 = sbr.rel (%p25) target = $region8
  $region5: #{generator_loss.3} parent=0 // loop_body
    %s29 = ssub.s32 %s24, 1
    %s30 = ssub.s32 %s24, 2
    %s37 = sadd.s32 1, %s32
    %p38 = scmp.ge.s32.totalorder %s37, 6
    %s39 = scalar_select %p38, 0, %s37
    %s40 = sadd.s32 1, %s31
    %s41 = scalar_select %p38, %s40, %s31
    %p42 = scmp.ge.s32.totalorder %s41, 2
    %s43 = scalar_select %p42, 0, %s41
    %s44 = smul.u32 %s31, 6
    %s45 = sadd.s32 %s44, %s32
    %s46 = sld [smem:[#allocation3 + %s45]]
    %s47 = smul.u32 %s43, 6
    %s48 = sadd.s32 %s47, %s39
    %s49 = sld [smem:[#allocation3 + %s48]]
    %s50 = ssub.s32 %s46, %s49
    %p51 = scmp.eq.s32.totalorder %s50, 0
    %s53 = sadd.s32 %s52, 1
    %s54 = scalar_select %p51, %s52, %s53
    %p57 = pneg %p51
    %p58 = scmp.eq.s32.totalorder %s24, 11
    %p59 = por %p57, %p58
    %p60 = scmp.ne.s32.totalorder %s52, %s55
    %p61 = scmp.eq.s32.totalorder %s24, 0
    %p62 = por %p60, %p61
    %p63 = scmp.ne.s32.totalorder %s52, %s55
    %p64 = scmp.eq.s32.totalorder %s29, 11
    %p65 = por %p63, %p64
    %p66 = scmp.ne.s32.totalorder %s55, %s56
    %p67 = scmp.eq.s32.totalorder %s29, 0
    %p68 = por %p66, %p67
    %p69 = scmp.ne.s32.totalorder %s55, %s56
    %p70 = scmp.eq.s32.totalorder %s30, 11
    %p71 = por %p69, %p70
    %p73 = scmp.ne.s32.totalorder %s56, %s72
    %p74 = scmp.eq.s32.totalorder %s30, 0
    %p75 = por %p73, %p74
    %s76 = smul.u32 %s31, 6
    %s77 = sadd.s32 %s76, %s32
    %s78 = sld [smem:[#allocation4 + %s77]]
    %s79 = smul.u32 %s43, 6
    %s80 = sadd.s32 %s79, %s39
    %s81 = sld [smem:[#allocation4 + %s80]]
    %s82 = ssub.s32 %s78, %s81
    %p83 = scmp.eq.s32.totalorder %s82, 0
    %s85 = sadd.s32 %s84, 1
    %s86 = scalar_select %p83, %s84, %s85
    %p89 = pneg %p83
    %p90 = scmp.eq.s32.totalorder %s24, 11
    %p91 = por %p89, %p90
    %p92 = scmp.ne.s32.totalorder %s84, %s87
    %p93 = scmp.eq.s32.totalorder %s24, 0
    %p94 = por %p92, %p93
    %p95 = scmp.ne.s32.totalorder %s84, %s87
    %p96 = scmp.eq.s32.totalorder %s29, 11
    %p97 = por %p95, %p96
    %p98 = scmp.ne.s32.totalorder %s87, %s88
    %p99 = scmp.eq.s32.totalorder %s29, 0
    %p100 = por %p98, %p99
    %p101 = scmp.ne.s32.totalorder %s87, %s88
    %p102 = scmp.eq.s32.totalorder %s30, 11
    %p103 = por %p101, %p102
    %p105 = scmp.ne.s32.totalorder %s88, %s104
    %p106 = scmp.eq.s32.totalorder %s30, 0
    %p107 = por %p105, %p106
    %p108 = scmp.le.s32.totalorder 1, %s24
    %p109 = scmp.lt.s32.totalorder %s24, 13
    %p110 = pnand %p108, %p109
    %p111 = pneg %p110
    // Predicated region
    $region9: #{generator_loss.3} parent=5 // pred_check
      _
    $region10: #{generator_loss.3} parent=5 // pred_check_branch
      %113 = sbr.rel (%p110) target = $region12
    $region11: #{generator_loss.3} parent=5 // pred_region
      %s114 = ssub.s32 %s24, 1
    $region12: #{generator_loss.3} parent=5 // pred_fallthru
      _
    %p115 = scmp.lt.s32.totalorder %s24, 12
    // Predicated region
    $region13: #{generator_loss.3} parent=5 // pred_check
      %p116 = pneg %p115
    $region14: #{generator_loss.3} parent=5 // pred_check_branch
      %118 = sbr.rel (%p116) target = $region16
    $region15: #{generator_loss.3} parent=5 // pred_region
      // Predicated region
      $region17: #{generator_loss.3} parent=15 // pred_check
        %p119 = pneg %p62
      $region18: #{generator_loss.3} parent=15 // pred_check_branch
        %121 = sbr.rel (%p119) target = $region20
      $region19: #{generator_loss.3} parent=15 // pred_region
        %s122 = smul.u32 %s31, 6
        %s123 = sadd.s32 %s122, %s32
        %s124 = sld [smem:[#allocation3 + %s123]]
        %s125 = smul.u32 8, %s124
        %p126 = scmp.lt.s32.totalorder %s125, 95
        %s127 = scalar_select %p126, %s125, 95
        %s128 = smul.addr %s127, 8
        %s129 = scalar_lea.vmem %s3, %s128
        %s130 = smul.u32 %s31, 6
        %s131 = sadd.s32 %s130, %s32
        %s132 = sld [smem:[#allocation3 + %s131]]
        %s133 = smul.u32 8, %s132
      $region20: #{generator_loss.3} parent=15 // pred_fallthru
        _
    $region16: #{generator_loss.3} parent=5 // pred_fallthru
      _
    %p134 = scmp.le.s32.totalorder 1, %s24
    %p135 = scmp.lt.s32.totalorder %s24, 13
    %p136 = pnand %p134, %p135
    %p137 = pneg %p136
    // Predicated region
    $region21: #{generator_loss.3} parent=5 // pred_check
      _
    $region22: #{generator_loss.3} parent=5 // pred_check_branch
      %139 = sbr.rel (%p136) target = $region24
    $region23: #{generator_loss.3} parent=5 // pred_region
      %s140 = ssub.s32 %s24, 1
      %s141 = smul.u32 %s33, 6
      %s142 = sadd.s32 %s141, %s34
      %s143 = sld [smem:[#allocation3 + %s142]]
      %s144 = smul.u32 8, %s143
      %p145 = scmp.lt.s32.totalorder %s144, 95
      %s146 = scalar_select %p145, %s144, 95
      %s147 = smul.addr %s146, 8
      %s148 = scalar_lea.vmem %s3, %s147
      %p149 = pneg %p68
      %p150 = pneg %p65
      %p151 = pneg %p100
      %p152 = pneg %p97
      %s153 = smul.u32 %s33, 6
      %s154 = sadd.s32 %s153, %s34
      %s155 = sld [smem:[#allocation4 + %s154]]
      %p156 = scmp.lt.s32.totalorder %s155, 11
      %s157 = scalar_select %p156, %s155, 11
      %s158 = smul.addr %s157, 8
      %s159 = scalar_lea.vmem %s4, %s158
      %s160 = smul.u32 %s33, 6
      %s161 = sadd.s32 %s160, %s34
      %s162 = sld [smem:[#allocation3 + %s161]]
      %s163 = smul.u32 8, %s162
      %p164 = scmp.lt.s32.totalorder %s163, 95
      %s165 = scalar_select %p164, %s163, 95
      %s166 = smul.addr %s165, 8
      %s167 = scalar_lea.vmem %s3, %s166
      %s168 = smul.u32 %s33, 6
      %s169 = sadd.s32 %s168, %s34
      %s170 = sld [smem:[#allocation3 + %s169]]
      %s171 = smul.u32 8, %s170
      %s172 = smul.u32 %s33, 6
      %s173 = sadd.s32 %s172, %s34
      %s174 = sld [smem:[#allocation4 + %s173]]
      %p175 = scmp.lt.s32.totalorder %s174, 11
      %s176 = scalar_select %p175, %s174, 11
      %s177 = smul.addr %s176, 8
      %s178 = scalar_lea.vmem %s4, %s177
      %s179 = smul.u32 %s33, 6
      %s180 = sadd.s32 %s179, %s34
      %s181 = sld [smem:[#allocation4 + %s180]]
      %s182 = smul.u32 %s33, 6
      %s183 = sadd.s32 %s182, %s34
      %s184 = sld [smem:[#allocation5 + %s183]]
      %p185 = scmp.eq.s32.totalorder %s184, 1
      // Predicated region
      $region25: #{generator_loss.3} parent=23 // pred_check
        %p186 = pneg %p185
      $region26: #{generator_loss.3} parent=23 // pred_check_branch
        %188 = sbr.rel (%p186) target = $region28
      $region27: #{generator_loss.3} parent=23 // pred_region
        %189 = vst [vmem:[%s178] sm:$0xff] 0.0
      $region28: #{generator_loss.3} parent=23 // pred_fallthru
        _
      %v190 = vld [vmem:[%s178] sm:$0xff]
      %v191 = vld [vmem:[%s167] sm:$0xff]
      %v192 = vld [vmem:[%s167 + $0x8] sm:$0xff]
      %v193 = vld [vmem:[%s167 + $0x10] sm:$0xff]
      %v194 = vld [vmem:[%s167 + $0x18] sm:$0xff]
      %v195 = vld [vmem:[%s167 + $0x20] sm:$0xff]
      %v196 = vld [vmem:[%s167 + $0x28] sm:$0xff]
      %v197 = vld [vmem:[%s167 + $0x30] sm:$0xff]
      %v198 = vld [vmem:[%s167 + $0x38] sm:$0xff]
      %v199 = vand.u32 2147483647, %v191
      %v200 = vand.u32 2147483647, %v192
      %v201 = vand.u32 2147483647, %v193
      %v202 = vand.u32 2147483647, %v194
      %v203 = vand.u32 2147483647, %v195
      %v204 = vand.u32 2147483647, %v196
      %v205 = vand.u32 2147483647, %v197
      %v206 = vand.u32 2147483647, %v198
      %v207 = vadd.f32 %v199, %v200
      %v208 = vadd.f32 %v207, %v201
      %v209 = vadd.f32 %v208, %v202
      %v210 = vadd.f32 %v209, %v203
      %v211 = vadd.f32 %v210, %v204
      %v212 = vadd.f32 %v211, %v205
      %v213 = vadd.f32 %v212, %v206
      %v214 = vadd.f32 %v190, %v213
      %215 = vst [vmem:[%s178] sm:$0xff] %v214
      %s216 = smul.u32 %s33, 6
      %s217 = sadd.s32 %s216, %s34
      %s218 = sld [smem:[#allocation4 + %s217]]
      %p219 = scmp.lt.s32.totalorder %s218, 11
      %s220 = scalar_select %p219, %s218, 11
      %s221 = smul.addr %s220, 8
      %s222 = scalar_lea.vmem %s4, %s221
      // Predicated region
      $region29: #{generator_loss.3} parent=23 // pred_check
        %p223 = pneg %p97
      $region30: #{generator_loss.3} parent=23 // pred_check_branch
        %225 = sbr.rel (%p223) target = $region32
      $region31: #{generator_loss.3} parent=23 // pred_region
        %s226 = smul.u32 %s33, 6
        %s227 = sadd.s32 %s226, %s34
        %s228 = sld [smem:[#allocation4 + %s227]]
      $region32: #{generator_loss.3} parent=23 // pred_fallthru
        _
    $region24: #{generator_loss.3} parent=5 // pred_fallthru
      _
    %p229 = scmp.le.s32.totalorder 2, %s24
    // Predicated region
    $region33: #{generator_loss.3} parent=5 // pred_check
      %p230 = pneg %p229
    $region34: #{generator_loss.3} parent=5 // pred_check_branch
      %232 = sbr.rel (%p230) target = $region36
    $region35: #{generator_loss.3} parent=5 // pred_region
      %s233 = ssub.s32 %s24, 2
      // Predicated region
      $region37: #{generator_loss.3} parent=35 // pred_check
        %p234 = pneg %p103
      $region38: #{generator_loss.3} parent=35 // pred_check_branch
        %236 = sbr.rel (%p234) target = $region40
      $region39: #{generator_loss.3} parent=35 // pred_region
        %s237 = smul.u32 %s35, 6
        %s238 = sadd.s32 %s237, %s36
        %s239 = sld [smem:[#allocation4 + %s238]]
        %p240 = scmp.lt.s32.totalorder %s239, 11
        %s241 = scalar_select %p240, %s239, 11
        %s242 = smul.addr %s241, 8
        %s243 = scalar_lea.vmem %s4, %s242
      $region40: #{generator_loss.3} parent=35 // pred_fallthru
        _
    $region36: #{generator_loss.3} parent=5 // pred_fallthru
      _
  $region6: #{generator_loss.3} parent=0 // loop_footer
    %s28 = sadd.s32 1, %s24
  $region7: #{generator_loss.3} parent=0 // loop_footer_branch
    %23 = sbr.rel target = $region3
  $region8: #{generator_loss.3} parent=0 // loop_exit
    _

</llo_original>
